<compile_context>
chip_gen: v7x
topology: tpu7x:2x2x1
jax: 0.10.0
libtpu: 0.0.40
codegen_flags: <defaults>
</compile_context>

<pallas_src>
import functools

import jax
import jax.numpy as jnp
from jax import lax
from jax.experimental import pallas as pl
from jax.experimental.pallas import tpu as pltpu


def _round_up(v, m):
    return (v + m - 1) // m * m


def _energy_kernel(x_hbm, out_ref, buf, sem, acc,
                   *, energy_type, h, X, Yt, Zt, Yp, Zp, cx, S, NC):
    """One grid step == one displacement component [X, Yp, Zp] resident in HBM.

    Walks X in NC slabs of S = cx + 2*h rows (halo h each side) with a manual
    double-buffered DMA, accumulates the masked energy sum into `acc`, and writes the
    per-component partial sum to out_ref.
    """
    n = pl.program_id(0)

    def slab_copy(c):
        # Input rows [s0, s0 + S); the last slab is clamped so it never runs past X.
        s0 = jnp.minimum(c * cx, X - S)
        return pltpu.make_async_copy(
            x_hbm.at[n, pl.ds(s0, S)], buf.at[c % 2], sem.at[c % 2])

    # Prime the pipeline and reset the per-component accumulator.
    slab_copy(0).start()
    acc[...] = jnp.zeros_like(acc)

    # Interior mask over (Y, Z): voxels at distance >= h from the *true* borders.
    # Padded rows/lanes are automatically excluded because Yt - 1 - h < Yt <= Yp.
    yi = lax.broadcasted_iota(jnp.int32, (cx, Yp, Zp), 1)
    zi = lax.broadcasted_iota(jnp.int32, (cx, Yp, Zp), 2)
    ri = lax.broadcasted_iota(jnp.int32, (cx, Yp, Zp), 0)
    yz_ok = (yi >= h) & (yi <= Yt - 1 - h) & (zi >= h) & (zi <= Zt - 1 - h)

    def d_roll(f, axis, dim):
        # Central difference along a sublane/lane axis via XLU rotations (full-width,
        # unmasked).  Sign convention does not matter: every use is squared or abs()-ed.
        return (pltpu.roll(f, 1, axis) - pltpu.roll(f, dim - 1, axis)) * 0.5

    @pl.loop(0, NC)
    def _(c):
        slot = c % 2
        slab_copy(c).wait()

        @pl.when(c + 1 < NC)
        def _():
            slab_copy(c + 1).start()

        x = buf[slot].astype(jnp.float32)            # [S, Yp, Zp]
        s0 = jnp.minimum(c * cx, X - S)
        rmin = c * cx - s0                           # rows already owned by chunk c-1 (clamped last slab)
        ok = yz_ok & (ri >= rmin)

        if energy_type == "bending":
            dxf = (x[2:] - x[:-2]) * 0.5             # slab rows 1 .. S-2
            dyf = d_roll(x, 1, Yp)                   # slab rows 0 .. S-1
            dzf = d_roll(x, 2, Zp)

            # Fused per-term accumulation: only one second derivative live at a time.
            dxx = (dxf[2:] - dxf[:-2]) * 0.5         # slab rows 2 .. S-3  -> cx rows
            part = jnp.where(ok, dxx * dxx, 0.0)
            dyy = d_roll(dyf, 1, Yp)[2:-2]
            part = part + jnp.where(ok, dyy * dyy, 0.0)
            dzz = d_roll(dzf, 2, Zp)[2:-2]
            part = part + jnp.where(ok, dzz * dzz, 0.0)
            dxy = d_roll(dxf, 1, Yp)[1:-1]
            part = part + 2.0 * jnp.where(ok, dxy * dxy, 0.0)
            dxz = d_roll(dxf, 2, Zp)[1:-1]
            part = part + 2.0 * jnp.where(ok, dxz * dxz, 0.0)
            dyz = d_roll(dyf, 2, Zp)[2:-2]
            part = part + 2.0 * jnp.where(ok, dyz * dyz, 0.0)
        else:
            dx = (x[2:] - x[:-2]) * 0.5              # slab rows 1 .. S-2 -> cx rows
            dy = d_roll(x, 1, Yp)[1:-1]
            dz = d_roll(x, 2, Zp)[1:-1]
            if energy_type == "gradient-l2":
                part = jnp.where(ok, dx * dx + dy * dy + dz * dz, 0.0)
            else:  # gradient-l1
                part = jnp.where(ok, jnp.abs(dx) + jnp.abs(dy) + jnp.abs(dz), 0.0)

        acc[...] = acc[...] + jnp.sum(part).reshape(1, 1)

    out_ref[...] = acc[...].reshape(1, 1, 1)


_VALID = ("bending", "gradient-l2", "gradient-l1")


def displacement_regularizer(disp, energy_type, *, x_chunk=None):
    """disp: [B, 3, X, Y, Z] float array.  Returns the scalar f32 energy (torch-equivalent)."""
    if energy_type not in _VALID:
        raise Exception("Not recognised local regulariser!")
    B, C, X, Y, Z = disp.shape
    assert C == 3, "displacement field must have 3 components"
    h = 2 if energy_type == "bending" else 1
    assert X >= 2 * h + 1 and Y >= 2 * h + 1 and Z >= 2 * h + 1

    N = B * C
    x4 = disp.reshape(N, X, Y, Z)

    # Lane/sublane alignment: pad Z to a multiple of 128 and Y to a multiple of 8 so that
    # pltpu.roll and all VPU ops run full-width; padded voxels are masked out in-kernel.
    Yp, Zp = _round_up(Y, 8), _round_up(Z, 128)
    if (Yp, Zp) != (Y, Z):
        x4 = jnp.pad(x4, ((0, 0), (0, 0), (0, Yp - Y), (0, Zp - Z)))

    Xi = X - 2 * h                           # number of interior X rows
    if x_chunk is None:
        # ~12 slab-sized f32 arrays live at once (input double-buffer + intermediates);
        # keep them around ~12 MiB so the kernel fits comfortably inside scoped VMEM on
        # v5e/v6e and inside v7x's smaller 64 MiB VMEM.
        row_bytes = Yp * Zp * 4
        x_chunk = max(1, (12 * 1024 * 1024) // (12 * row_bytes) - 2 * h)
    cx = int(max(1, min(int(x_chunk), Xi)))
    NC = -(-Xi // cx)                        # number of X slabs per component
    S = cx + 2 * h                           # slab rows including halo

    kernel = functools.partial(
        _energy_kernel, energy_type=energy_type, h=h, X=X, Yt=Y, Zt=Z,
        Yp=Yp, Zp=Zp, cx=cx, S=S, NC=NC)

    partial_sums = pl.pallas_call(
        kernel,
        out_shape=jax.ShapeDtypeStruct((N, 1, 1), jnp.float32),
        grid_spec=pltpu.PrefetchScalarGridSpec(
            num_scalar_prefetch=0,
            grid=(N,),
            in_specs=[pl.BlockSpec(memory_space=pl.ANY)],     # stays in HBM; manual slab DMA
            out_specs=pl.BlockSpec((1, 1, 1), lambda n: (n, 0, 0)),
            scratch_shapes=[
                pltpu.VMEM((2, S, Yp, Zp), x4.dtype),         # double-buffered input slabs
                pltpu.SemaphoreType.DMA((2,)),
                pltpu.VMEM((1, 1), jnp.float32),              # per-component accumulator
            ]),
        compiler_params=pltpu.CompilerParams(
            dimension_semantics=("parallel",),                # shard components across TCs (v7x)
            vmem_limit_bytes=48 * 1024 * 1024),
    )(x4)

    count = float(N) * (X - 2 * h) * (Y - 2 * h) * (Z - 2 * h)
    energy = jnp.sum(partial_sums) / count
    if energy_type != "bending":
        energy = energy / 3.0
    return energy


# ---------------- pure-JAX reference (mirrors the PyTorch module exactly) --------------

def _reference(disp, energy_type):
    x = disp.reshape(disp.shape[0] * 3, *disp.shape[2:]).astype(jnp.float32)
    ddx = lambda f: (f[:, 2:, 1:-1, 1:-1] - f[:, :-2, 1:-1, 1:-1]) * 0.5
    ddy = lambda f: (f[:, 1:-1, 2:, 1:-1] - f[:, 1:-1, :-2, 1:-1]) * 0.5
    ddz = lambda f: (f[:, 1:-1, 1:-1, 2:] - f[:, 1:-1, 1:-1, :-2]) * 0.5
    dx, dy, dz = ddx(x), ddy(x), ddz(x)
    if energy_type == "bending":
        dxx, dyy, dzz = ddx(dx), ddy(dy), ddz(dz)
        dxy, dyz, dxz = ddy(dx), ddz(dy), ddz(dx)
        return jnp.mean(dxx**2 + dyy**2 + dzz**2 + 2 * dxy**2 + 2 * dxz**2 + 2 * dyz**2)
    if energy_type == "gradient-l2":
        return jnp.mean(dx**2 + dy**2 + dz**2) / 3.0
    if energy_type == "gradient-l1":
        return jnp.mean(jnp.abs(dx) + jnp.abs(dy) + jnp.abs(dz)) / 3.0
    raise Exception("Not recognised local regulariser!")


if __name__ == "__main__":
    key = jax.random.PRNGKey(0)
    # disp: [B, 3, X, Y, Z] displacement field
    disp = jax.random.normal(key, (2, 3, 16, 16, 16), dtype=jnp.float32)

    ok = True
    for et in ("bending", "gradient-l2", "gradient-l1"):
        ref = _reference(disp, et)
        # Default chunking (single slab) and a small chunk that exercises the
        # multi-slab double-buffered path including the clamped remainder slab.
        for chunk in (None, 5):
            e = jax.block_until_ready(displacement_regularizer(disp, et, x_chunk=chunk))
            if not jnp.allclose(e, ref, rtol=1e-4, atol=1e-6):
                ok = False
                print(f"MISMATCH for {et} (x_chunk={chunk}): kernel={float(e)} ref={float(ref)}")

    if ok:
        print("KERNEL_OK")
</pallas_src>

<mosaic_0001>
module attributes {stable_mosaic.version = 11 : i64} {
  func.func @_energy_kernel(%arg0: i32, %arg1: memref<6x16x16x128xf32, #tpu.memory_space<any>>, %arg2: memref<1x1x1xf32, #tpu.memory_space<vmem>>, %arg3: memref<2x16x16x128xf32, #tpu.memory_space<vmem>>, %arg4: memref<2x!tpu.dma_semaphore, #tpu.memory_space<semaphore_mem>>, %arg5: memref<1x1xf32, #tpu.memory_space<vmem>>) attributes {dimension_semantics = [#tpu.dimension_semantics<parallel>], iteration_bounds = array<i64: 6>, scalar_prefetch = 0 : i64, scratch_operands = 3 : i64, tpu.core_type = #tpu.core_type<tc>, window_params = [{}, {transform_indices = @transform_1, window_bounds = array<i64: 1, 1, 1>}]} {
    %c0_i32 = arith.constant 0 : i32
    %c0_i32_0 = arith.constant 0 : i32
    %0 = arith.minsi %c0_i32, %c0_i32_0 : i32
    %c0_i32_1 = arith.constant 0 : i32
    %c0_i32_2 = arith.constant 0 : i32
    %c0_i32_3 = arith.constant 0 : i32
    %c0_i32_4 = arith.constant 0 : i32
    %1 = tpu.memref_slice %arg1[%arg0, %0, %c0_i32_3, %c0_i32_4] : memref<6x16x16x128xf32, #tpu.memory_space<any>> -> memref<1x16x16x128xf32, #tpu.memory_space<any>>
    %2 = tpu.memref_squeeze %1 : memref<1x16x16x128xf32, #tpu.memory_space<any>> -> memref<16x16x128xf32, #tpu.memory_space<any>>
    %c0_i32_5 = arith.constant 0 : i32
    %c0_i32_6 = arith.constant 0 : i32
    %c0_i32_7 = arith.constant 0 : i32
    %3 = tpu.memref_slice %arg3[%c0_i32_1, %c0_i32_5, %c0_i32_6, %c0_i32_7] : memref<2x16x16x128xf32, #tpu.memory_space<vmem>> -> memref<1x16x16x128xf32, #tpu.memory_space<vmem>>
    %4 = tpu.memref_squeeze %3 : memref<1x16x16x128xf32, #tpu.memory_space<vmem>> -> memref<16x16x128xf32, #tpu.memory_space<vmem>>
    %5 = tpu.memref_slice %arg4[%c0_i32_2] : memref<2x!tpu.dma_semaphore, #tpu.memory_space<semaphore_mem>> -> memref<1x!tpu.dma_semaphore, #tpu.memory_space<semaphore_mem>>
    %6 = tpu.memref_squeeze %5 : memref<1x!tpu.dma_semaphore, #tpu.memory_space<semaphore_mem>> -> memref<!tpu.dma_semaphore, #tpu.memory_space<semaphore_mem>>
    tpu.enqueue_dma source(%2 : memref<16x16x128xf32, #tpu.memory_space<any>>) target(%4 : memref<16x16x128xf32, #tpu.memory_space<vmem>>) target_semaphore(%6 : memref<!tpu.dma_semaphore, #tpu.memory_space<semaphore_mem>>)
    %cst = arith.constant 0.000000e+00 : f32
    %7 = vector.broadcast %cst : f32 to vector<1x1xf32>
    %c0 = arith.constant 0 : index
    %c0_8 = arith.constant 0 : index
    %8 = vector.load %arg5[%c0, %c0_8] : memref<1x1xf32, #tpu.memory_space<vmem>>, vector<1x1xf32>
    tpu.vector_store %arg5[%c0, %c0_8], %7 {strides = array<i32>} : memref<1x1xf32, #tpu.memory_space<vmem>>, vector<1x1xf32>,
    %9 = tpu.iota {dimensions = array<i32: 1>} : vector<12x16x128xi32>
    %10 = tpu.iota {dimensions = array<i32: 2>} : vector<12x16x128xi32>
    %11 = tpu.iota {dimensions = array<i32: 0>} : vector<12x16x128xi32>
    %c2_i32 = arith.constant 2 : i32
    %12 = vector.broadcast %c2_i32 : i32 to vector<12x16x128xi32>
    %13 = arith.cmpi sge, %9, %12 : vector<12x16x128xi32>
    %c13_i32 = arith.constant 13 : i32
    %14 = vector.broadcast %c13_i32 : i32 to vector<12x16x128xi32>
    %15 = arith.cmpi sle, %9, %14 : vector<12x16x128xi32>
    %16 = arith.andi %13, %15 : vector<12x16x128xi1>
    %c2_i32_9 = arith.constant 2 : i32
    %17 = vector.broadcast %c2_i32_9 : i32 to vector<12x16x128xi32>
    %18 = arith.cmpi sge, %10, %17 : vector<12x16x128xi32>
    %19 = arith.andi %16, %18 : vector<12x16x128xi1>
    %c13_i32_10 = arith.constant 13 : i32
    %20 = vector.broadcast %c13_i32_10 : i32 to vector<12x16x128xi32>
    %21 = arith.cmpi sle, %10, %20 : vector<12x16x128xi32>
    %22 = arith.andi %19, %21 : vector<12x16x128xi1>
    %c0_i32_11 = arith.constant 0 : i32
    %c1_i32 = arith.constant 1 : i32
    %23 = arith.muli %c0_i32_11, %c1_i32 : i32
    %c0_i32_12 = arith.constant 0 : i32
    %24 = arith.addi %c0_i32_12, %23 : i32
    %c2_i32_13 = arith.constant 2 : i32
    %c0_i32_14 = arith.constant 0 : i32
    %25 = arith.cmpi eq, %c2_i32_13, %c0_i32_14 : i32
    %c1_i32_15 = arith.constant 1 : i32
    %26 = arith.select %25, %c1_i32_15, %c2_i32_13 : i32
    %27 = arith.remsi %24, %26 : i32
    %c0_i32_16 = arith.constant 0 : i32
    %28 = arith.cmpi ne, %27, %c0_i32_16 : i32
    %c0_i32_17 = arith.constant 0 : i32
    %29 = arith.cmpi slt, %27, %c0_i32_17 : i32
    %c0_i32_18 = arith.constant 0 : i32
    %30 = arith.cmpi slt, %26, %c0_i32_18 : i32
    %31 = arith.xori %29, %30 : i1
    %32 = arith.andi %31, %28 : i1
    %33 = arith.addi %27, %26 : i32
    %34 = arith.select %32, %33, %27 : i32
    %c12_i32 = arith.constant 12 : i32
    %35 = arith.muli %24, %c12_i32 : i32
    %c0_i32_19 = arith.constant 0 : i32
    %36 = arith.minsi %35, %c0_i32_19 : i32
    %c2_i32_20 = arith.constant 2 : i32
    %c0_i32_21 = arith.constant 0 : i32
    %37 = arith.cmpi eq, %c2_i32_20, %c0_i32_21 : i32
    %c1_i32_22 = arith.constant 1 : i32
    %38 = arith.select %37, %c1_i32_22, %c2_i32_20 : i32
    %39 = arith.remsi %24, %38 : i32
    %c0_i32_23 = arith.constant 0 : i32
    %40 = arith.cmpi ne, %39, %c0_i32_23 : i32
    %c0_i32_24 = arith.constant 0 : i32
    %41 = arith.cmpi slt, %39, %c0_i32_24 : i32
    %c0_i32_25 = arith.constant 0 : i32
    %42 = arith.cmpi slt, %38, %c0_i32_25 : i32
    %43 = arith.xori %41, %42 : i1
    %44 = arith.andi %43, %40 : i1
    %45 = arith.addi %39, %38 : i32
    %46 = arith.select %44, %45, %39 : i32
    %c2_i32_26 = arith.constant 2 : i32
    %c0_i32_27 = arith.constant 0 : i32
    %47 = arith.cmpi eq, %c2_i32_26, %c0_i32_27 : i32
    %c1_i32_28 = arith.constant 1 : i32
    %48 = arith.select %47, %c1_i32_28, %c2_i32_26 : i32
    %49 = arith.remsi %24, %48 : i32
    %c0_i32_29 = arith.constant 0 : i32
    %50 = arith.cmpi ne, %49, %c0_i32_29 : i32
    %c0_i32_30 = arith.constant 0 : i32
    %51 = arith.cmpi slt, %49, %c0_i32_30 : i32
    %c0_i32_31 = arith.constant 0 : i32
    %52 = arith.cmpi slt, %48, %c0_i32_31 : i32
    %53 = arith.xori %51, %52 : i1
    %54 = arith.andi %53, %50 : i1
    %55 = arith.addi %49, %48 : i32
    %56 = arith.select %54, %55, %49 : i32
    %c0_i32_32 = arith.constant 0 : i32
    %c0_i32_33 = arith.constant 0 : i32
    %57 = tpu.memref_slice %arg1[%arg0, %36, %c0_i32_32, %c0_i32_33] : memref<6x16x16x128xf32, #tpu.memory_space<any>> -> memref<1x16x16x128xf32, #tpu.memory_space<any>>
    %58 = tpu.memref_squeeze %57 : memref<1x16x16x128xf32, #tpu.memory_space<any>> -> memref<16x16x128xf32, #tpu.memory_space<any>>
    %c0_i32_34 = arith.constant 0 : i32
    %c0_i32_35 = arith.constant 0 : i32
    %c0_i32_36 = arith.constant 0 : i32
    %59 = tpu.memref_slice %arg3[%46, %c0_i32_34, %c0_i32_35, %c0_i32_36] : memref<2x16x16x128xf32, #tpu.memory_space<vmem>> -> memref<1x16x16x128xf32, #tpu.memory_space<vmem>>
    %60 = tpu.memref_squeeze %59 : memref<1x16x16x128xf32, #tpu.memory_space<vmem>> -> memref<16x16x128xf32, #tpu.memory_space<vmem>>
    %61 = tpu.memref_slice %arg4[%56] : memref<2x!tpu.dma_semaphore, #tpu.memory_space<semaphore_mem>> -> memref<1x!tpu.dma_semaphore, #tpu.memory_space<semaphore_mem>>
    %62 = tpu.memref_squeeze %61 : memref<1x!tpu.dma_semaphore, #tpu.memory_space<semaphore_mem>> -> memref<!tpu.dma_semaphore, #tpu.memory_space<semaphore_mem>>
    tpu.wait_dma2 semaphore(%62 : memref<!tpu.dma_semaphore, #tpu.memory_space<semaphore_mem>>) src(%58 : memref<16x16x128xf32, #tpu.memory_space<any>>) dst(%60 : memref<16x16x128xf32, #tpu.memory_space<vmem>>)
    %c1_i32_37 = arith.constant 1 : i32
    %63 = arith.addi %24, %c1_i32_37 : i32
    %c1_i32_38 = arith.constant 1 : i32
    %64 = arith.cmpi slt, %63, %c1_i32_38 : i32
    %65 = arith.extui %64 : i1 to i32
    %c0_i32_39 = arith.constant 0 : i32
    %66 = arith.cmpi ne, %65, %c0_i32_39 : i32
    scf.if %66 {
      %c1_i32_87 = arith.constant 1 : i32
      %167 = arith.addi %24, %c1_i32_87 : i32
      %c12_i32_88 = arith.constant 12 : i32
      %168 = arith.muli %167, %c12_i32_88 : i32
      %c0_i32_89 = arith.constant 0 : i32
      %169 = arith.minsi %168, %c0_i32_89 : i32
      %c2_i32_90 = arith.constant 2 : i32
      %c0_i32_91 = arith.constant 0 : i32
      %170 = arith.cmpi eq, %c2_i32_90, %c0_i32_91 : i32
      %c1_i32_92 = arith.constant 1 : i32
      %171 = arith.select %170, %c1_i32_92, %c2_i32_90 : i32
      %172 = arith.remsi %167, %171 : i32
      %c0_i32_93 = arith.constant 0 : i32
      %173 = arith.cmpi ne, %172, %c0_i32_93 : i32
      %c0_i32_94 = arith.constant 0 : i32
      %174 = arith.cmpi slt, %172, %c0_i32_94 : i32
      %c0_i32_95 = arith.constant 0 : i32
      %175 = arith.cmpi slt, %171, %c0_i32_95 : i32
      %176 = arith.xori %174, %175 : i1
      %177 = arith.andi %176, %173 : i1
      %178 = arith.addi %172, %171 : i32
      %179 = arith.select %177, %178, %172 : i32
      %c2_i32_96 = arith.constant 2 : i32
      %c0_i32_97 = arith.constant 0 : i32
      %180 = arith.cmpi eq, %c2_i32_96, %c0_i32_97 : i32
      %c1_i32_98 = arith.constant 1 : i32
      %181 = arith.select %180, %c1_i32_98, %c2_i32_96 : i32
      %182 = arith.remsi %167, %181 : i32
      %c0_i32_99 = arith.constant 0 : i32
      %183 = arith.cmpi ne, %182, %c0_i32_99 : i32
      %c0_i32_100 = arith.constant 0 : i32
      %184 = arith.cmpi slt, %182, %c0_i32_100 : i32
      %c0_i32_101 = arith.constant 0 : i32
      %185 = arith.cmpi slt, %181, %c0_i32_101 : i32
      %186 = arith.xori %184, %185 : i1
      %187 = arith.andi %186, %183 : i1
      %188 = arith.addi %182, %181 : i32
      %189 = arith.select %187, %188, %182 : i32
      %c0_i32_102 = arith.constant 0 : i32
      %c0_i32_103 = arith.constant 0 : i32
      %190 = tpu.memref_slice %arg1[%arg0, %169, %c0_i32_102, %c0_i32_103] : memref<6x16x16x128xf32, #tpu.memory_space<any>> -> memref<1x16x16x128xf32, #tpu.memory_space<any>>
      %191 = tpu.memref_squeeze %190 : memref<1x16x16x128xf32, #tpu.memory_space<any>> -> memref<16x16x128xf32, #tpu.memory_space<any>>
      %c0_i32_104 = arith.constant 0 : i32
      %c0_i32_105 = arith.constant 0 : i32
      %c0_i32_106 = arith.constant 0 : i32
      %192 = tpu.memref_slice %arg3[%179, %c0_i32_104, %c0_i32_105, %c0_i32_106] : memref<2x16x16x128xf32, #tpu.memory_space<vmem>> -> memref<1x16x16x128xf32, #tpu.memory_space<vmem>>
      %193 = tpu.memref_squeeze %192 : memref<1x16x16x128xf32, #tpu.memory_space<vmem>> -> memref<16x16x128xf32, #tpu.memory_space<vmem>>
      %194 = tpu.memref_slice %arg4[%189] : memref<2x!tpu.dma_semaphore, #tpu.memory_space<semaphore_mem>> -> memref<1x!tpu.dma_semaphore, #tpu.memory_space<semaphore_mem>>
      %195 = tpu.memref_squeeze %194 : memref<1x!tpu.dma_semaphore, #tpu.memory_space<semaphore_mem>> -> memref<!tpu.dma_semaphore, #tpu.memory_space<semaphore_mem>>
      tpu.enqueue_dma source(%191 : memref<16x16x128xf32, #tpu.memory_space<any>>) target(%193 : memref<16x16x128xf32, #tpu.memory_space<vmem>>) target_semaphore(%195 : memref<!tpu.dma_semaphore, #tpu.memory_space<semaphore_mem>>)
    } else {
    }
    %67 = arith.index_cast %34 : i32 to index
    %c0_40 = arith.constant 0 : index
    %c0_41 = arith.constant 0 : index
    %c0_42 = arith.constant 0 : index
    %68 = vector.load %arg3[%67, %c0_40, %c0_41, %c0_42] : memref<2x16x16x128xf32, #tpu.memory_space<vmem>>, vector<1x16x16x128xf32>
    %69 = vector.shape_cast %68 : vector<1x16x16x128xf32> to vector<16x16x128xf32>
    %c12_i32_43 = arith.constant 12 : i32
    %70 = arith.muli %24, %c12_i32_43 : i32
    %c0_i32_44 = arith.constant 0 : i32
    %71 = arith.minsi %70, %c0_i32_44 : i32
    %c12_i32_45 = arith.constant 12 : i32
    %72 = arith.muli %24, %c12_i32_45 : i32
    %73 = arith.subi %72, %71 : i32
    %74 = vector.broadcast %73 : i32 to vector<12x16x128xi32>
    %75 = arith.cmpi sge, %11, %74 : vector<12x16x128xi32>
    %76 = arith.andi %22, %75 : vector<12x16x128xi1>
    %77 = vector.extract_strided_slice %69 {offsets = [2, 0, 0], sizes = [14, 16, 128], strides = [1, 1, 1]} : vector<16x16x128xf32> to vector<14x16x128xf32>
    %78 = vector.extract_strided_slice %69 {offsets = [0, 0, 0], sizes = [14, 16, 128], strides = [1, 1, 1]} : vector<16x16x128xf32> to vector<14x16x128xf32>
    %79 = arith.subf %77, %78 : vector<14x16x128xf32>
    %cst_46 = arith.constant 5.000000e-01 : f32
    %80 = vector.broadcast %cst_46 : f32 to vector<14x16x128xf32>
    %81 = arith.mulf %79, %80 : vector<14x16x128xf32>
    %c1_i32_47 = arith.constant 1 : i32
    %82 = tpu.dynamic_rotate %69 by %c1_i32_47 dim 1 : vector<16x16x128xf32>, i32 -> vector<16x16x128xf32>
    %c15_i32 = arith.constant 15 : i32
    %83 = tpu.dynamic_rotate %69 by %c15_i32 dim 1 : vector<16x16x128xf32>, i32 -> vector<16x16x128xf32>
    %84 = arith.subf %82, %83 : vector<16x16x128xf32>
    %cst_48 = arith.constant 5.000000e-01 : f32
    %85 = vector.broadcast %cst_48 : f32 to vector<16x16x128xf32>
    %86 = arith.mulf %84, %85 : vector<16x16x128xf32>
    %c1_i32_49 = arith.constant 1 : i32
    %87 = tpu.dynamic_rotate %69 by %c1_i32_49 dim 2 : vector<16x16x128xf32>, i32 -> vector<16x16x128xf32>
    %c127_i32 = arith.constant 127 : i32
    %88 = tpu.dynamic_rotate %69 by %c127_i32 dim 2 : vector<16x16x128xf32>, i32 -> vector<16x16x128xf32>
    %89 = arith.subf %87, %88 : vector<16x16x128xf32>
    %cst_50 = arith.constant 5.000000e-01 : f32
    %90 = vector.broadcast %cst_50 : f32 to vector<16x16x128xf32>
    %91 = arith.mulf %89, %90 : vector<16x16x128xf32>
    %92 = vector.extract_strided_slice %81 {offsets = [2, 0, 0], sizes = [12, 16, 128], strides = [1, 1, 1]} : vector<14x16x128xf32> to vector<12x16x128xf32>
    %93 = vector.extract_strided_slice %81 {offsets = [0, 0, 0], sizes = [12, 16, 128], strides = [1, 1, 1]} : vector<14x16x128xf32> to vector<12x16x128xf32>
    %94 = arith.subf %92, %93 : vector<12x16x128xf32>
    %cst_51 = arith.constant 5.000000e-01 : f32
    %95 = vector.broadcast %cst_51 : f32 to vector<12x16x128xf32>
    %96 = arith.mulf %94, %95 : vector<12x16x128xf32>
    %97 = arith.mulf %96, %96 : vector<12x16x128xf32>
    %cst_52 = arith.constant 0.000000e+00 : f32
    %98 = vector.broadcast %cst_52 : f32 to vector<12x16x128xf32>
    %99 = arith.select %76, %97, %98 : vector<12x16x128xi1>, vector<12x16x128xf32>
    %c1_i32_53 = arith.constant 1 : i32
    %100 = tpu.dynamic_rotate %86 by %c1_i32_53 dim 1 : vector<16x16x128xf32>, i32 -> vector<16x16x128xf32>
    %c15_i32_54 = arith.constant 15 : i32
    %101 = tpu.dynamic_rotate %86 by %c15_i32_54 dim 1 : vector<16x16x128xf32>, i32 -> vector<16x16x128xf32>
    %102 = arith.subf %100, %101 : vector<16x16x128xf32>
    %cst_55 = arith.constant 5.000000e-01 : f32
    %103 = vector.broadcast %cst_55 : f32 to vector<16x16x128xf32>
    %104 = arith.mulf %102, %103 : vector<16x16x128xf32>
    %105 = vector.extract_strided_slice %104 {offsets = [2, 0, 0], sizes = [12, 16, 128], strides = [1, 1, 1]} : vector<16x16x128xf32> to vector<12x16x128xf32>
    %106 = arith.mulf %105, %105 : vector<12x16x128xf32>
    %cst_56 = arith.constant 0.000000e+00 : f32
    %107 = vector.broadcast %cst_56 : f32 to vector<12x16x128xf32>
    %108 = arith.select %76, %106, %107 : vector<12x16x128xi1>, vector<12x16x128xf32>
    %109 = arith.addf %99, %108 : vector<12x16x128xf32>
    %c1_i32_57 = arith.constant 1 : i32
    %110 = tpu.dynamic_rotate %91 by %c1_i32_57 dim 2 : vector<16x16x128xf32>, i32 -> vector<16x16x128xf32>
    %c127_i32_58 = arith.constant 127 : i32
    %111 = tpu.dynamic_rotate %91 by %c127_i32_58 dim 2 : vector<16x16x128xf32>, i32 -> vector<16x16x128xf32>
    %112 = arith.subf %110, %111 : vector<16x16x128xf32>
    %cst_59 = arith.constant 5.000000e-01 : f32
    %113 = vector.broadcast %cst_59 : f32 to vector<16x16x128xf32>
    %114 = arith.mulf %112, %113 : vector<16x16x128xf32>
    %115 = vector.extract_strided_slice %114 {offsets = [2, 0, 0], sizes = [12, 16, 128], strides = [1, 1, 1]} : vector<16x16x128xf32> to vector<12x16x128xf32>
    %116 = arith.mulf %115, %115 : vector<12x16x128xf32>
    %cst_60 = arith.constant 0.000000e+00 : f32
    %117 = vector.broadcast %cst_60 : f32 to vector<12x16x128xf32>
    %118 = arith.select %76, %116, %117 : vector<12x16x128xi1>, vector<12x16x128xf32>
    %119 = arith.addf %109, %118 : vector<12x16x128xf32>
    %c1_i32_61 = arith.constant 1 : i32
    %120 = tpu.dynamic_rotate %81 by %c1_i32_61 dim 1 : vector<14x16x128xf32>, i32 -> vector<14x16x128xf32>
    %c15_i32_62 = arith.constant 15 : i32
    %121 = tpu.dynamic_rotate %81 by %c15_i32_62 dim 1 : vector<14x16x128xf32>, i32 -> vector<14x16x128xf32>
    %122 = arith.subf %120, %121 : vector<14x16x128xf32>
    %cst_63 = arith.constant 5.000000e-01 : f32
    %123 = vector.broadcast %cst_63 : f32 to vector<14x16x128xf32>
    %124 = arith.mulf %122, %123 : vector<14x16x128xf32>
    %125 = vector.extract_strided_slice %124 {offsets = [1, 0, 0], sizes = [12, 16, 128], strides = [1, 1, 1]} : vector<14x16x128xf32> to vector<12x16x128xf32>
    %126 = arith.mulf %125, %125 : vector<12x16x128xf32>
    %cst_64 = arith.constant 0.000000e+00 : f32
    %127 = vector.broadcast %cst_64 : f32 to vector<12x16x128xf32>
    %128 = arith.select %76, %126, %127 : vector<12x16x128xi1>, vector<12x16x128xf32>
    %cst_65 = arith.constant 2.000000e+00 : f32
    %129 = vector.broadcast %cst_65 : f32 to vector<12x16x128xf32>
    %130 = arith.mulf %129, %128 : vector<12x16x128xf32>
    %131 = arith.addf %119, %130 : vector<12x16x128xf32>
    %c1_i32_66 = arith.constant 1 : i32
    %132 = tpu.dynamic_rotate %81 by %c1_i32_66 dim 2 : vector<14x16x128xf32>, i32 -> vector<14x16x128xf32>
    %c127_i32_67 = arith.constant 127 : i32
    %133 = tpu.dynamic_rotate %81 by %c127_i32_67 dim 2 : vector<14x16x128xf32>, i32 -> vector<14x16x128xf32>
    %134 = arith.subf %132, %133 : vector<14x16x128xf32>
    %cst_68 = arith.constant 5.000000e-01 : f32
    %135 = vector.broadcast %cst_68 : f32 to vector<14x16x128xf32>
    %136 = arith.mulf %134, %135 : vector<14x16x128xf32>
    %137 = vector.extract_strided_slice %136 {offsets = [1, 0, 0], sizes = [12, 16, 128], strides = [1, 1, 1]} : vector<14x16x128xf32> to vector<12x16x128xf32>
    %138 = arith.mulf %137, %137 : vector<12x16x128xf32>
    %cst_69 = arith.constant 0.000000e+00 : f32
    %139 = vector.broadcast %cst_69 : f32 to vector<12x16x128xf32>
    %140 = arith.select %76, %138, %139 : vector<12x16x128xi1>, vector<12x16x128xf32>
    %cst_70 = arith.constant 2.000000e+00 : f32
    %141 = vector.broadcast %cst_70 : f32 to vector<12x16x128xf32>
    %142 = arith.mulf %141, %140 : vector<12x16x128xf32>
    %143 = arith.addf %131, %142 : vector<12x16x128xf32>
    %c1_i32_71 = arith.constant 1 : i32
    %144 = tpu.dynamic_rotate %86 by %c1_i32_71 dim 2 : vector<16x16x128xf32>, i32 -> vector<16x16x128xf32>
    %c127_i32_72 = arith.constant 127 : i32
    %145 = tpu.dynamic_rotate %86 by %c127_i32_72 dim 2 : vector<16x16x128xf32>, i32 -> vector<16x16x128xf32>
    %146 = arith.subf %144, %145 : vector<16x16x128xf32>
    %cst_73 = arith.constant 5.000000e-01 : f32
    %147 = vector.broadcast %cst_73 : f32 to vector<16x16x128xf32>
    %148 = arith.mulf %146, %147 : vector<16x16x128xf32>
    %149 = vector.extract_strided_slice %148 {offsets = [2, 0, 0], sizes = [12, 16, 128], strides = [1, 1, 1]} : vector<16x16x128xf32> to vector<12x16x128xf32>
    %150 = arith.mulf %149, %149 : vector<12x16x128xf32>
    %cst_74 = arith.constant 0.000000e+00 : f32
    %151 = vector.broadcast %cst_74 : f32 to vector<12x16x128xf32>
    %152 = arith.select %76, %150, %151 : vector<12x16x128xi1>, vector<12x16x128xf32>
    %cst_75 = arith.constant 2.000000e+00 : f32
    %153 = vector.broadcast %cst_75 : f32 to vector<12x16x128xf32>
    %154 = arith.mulf %153, %152 : vector<12x16x128xf32>
    %155 = arith.addf %143, %154 : vector<12x16x128xf32>
    %c0_76 = arith.constant 0 : index
    %c0_77 = arith.constant 0 : index
    %156 = vector.load %arg5[%c0_76, %c0_77] : memref<1x1xf32, #tpu.memory_space<vmem>>, vector<1x1xf32>
    %157 = vector.shape_cast %155 : vector<12x16x128xf32> to vector<1x12x16x128xf32>
    %cst_78 = arith.constant dense<0.000000e+00> : vector<1xf32>
    %158 = vector.multi_reduction <add>, %157, %cst_78 [1, 2, 3] : vector<1x12x16x128xf32> to vector<1xf32>
    %159 = vector.shape_cast %158 : vector<1xf32> to vector<1x1x1x1xf32>
    %160 = vector.extract %159[0, 0, 0, 0] : f32 from vector<1x1x1x1xf32>
    %161 = vector.broadcast %160 : f32 to vector<1x1xf32>
    %162 = arith.addf %156, %161 : vector<1x1xf32>
    %c0_79 = arith.constant 0 : index
    %c0_80 = arith.constant 0 : index
    %163 = vector.load %arg5[%c0_79, %c0_80] : memref<1x1xf32, #tpu.memory_space<vmem>>, vector<1x1xf32>
    tpu.vector_store %arg5[%c0_79, %c0_80], %162 {strides = array<i32>} : memref<1x1xf32, #tpu.memory_space<vmem>>, vector<1x1xf32>,
    %c1_i32_81 = arith.constant 1 : i32
    %c0_82 = arith.constant 0 : index
    %c0_83 = arith.constant 0 : index
    %164 = vector.load %arg5[%c0_82, %c0_83] : memref<1x1xf32, #tpu.memory_space<vmem>>, vector<1x1xf32>
    %165 = vector.shape_cast %164 : vector<1x1xf32> to vector<1x1x1xf32>
    %c0_84 = arith.constant 0 : index
    %c0_85 = arith.constant 0 : index
    %c0_86 = arith.constant 0 : index
    %166 = vector.load %arg2[%c0_84, %c0_85, %c0_86] : memref<1x1x1xf32, #tpu.memory_space<vmem>>, vector<1x1x1xf32>
    tpu.vector_store %arg2[%c0_84, %c0_85, %c0_86], %165 {strides = array<i32>} : memref<1x1x1xf32, #tpu.memory_space<vmem>>, vector<1x1x1xf32>,
    return
  }
  func.func @transform_1(%arg0: i32) -> (i32, i32, i32) {
    %c0_i32 = arith.constant 0 : i32
    %c0_i32_0 = arith.constant 0 : i32
    %c0_i32_1 = arith.constant 0 : i32
    return %arg0, %c0_i32, %c0_i32_0 : i32, i32, i32
  }
}

</mosaic_0001>

<llo_original>
// kernel: tpu_custom_call.1
$region0: #{tpu_custom_call.1}
  #allocation0 [shape = 'u32[]', space=smem, size = 0x4, offset = 0x4, fixed_abs, tag = 'smem constant byte address 0x4 - core index']
  #allocation1 [shape = 'u32[144,128]{1,0:T(1,128)}', space=vmem, size = 0x12000, scoped, tag = 'internal scratch']
  #allocation2 [shape = 'f32[2,16,16,128]{3,2,1,0:T(8,128)}', space=vmem, size = 0x40000, scoped, tag = 'scratch operand']
  #allocation3 [shape = 's32[2]{0}', space=sflag, size = 0x8, scoped, tag = 'scratch operand']
  #allocation4 [shape = 'f32[1,1]{1,0:T(1,128)}', space=vmem, size = 0x200, scoped, tag = 'scratch operand']
  #allocation5 [shape = 's32[]', space=sflag, size = 0x4, offset = 0, fixed_abs, tag = 'sflag constant byte address 0x0 - dummy sync flag']
  #allocation6 [shape = 's32[]', space=sflag, size = 0x4, offset = 0, fixed_abs, tag = 'sflag constant byte address 0x0 - dummy sync flag']
  #allocation7 [shape = 'u32[]', space=smem, size = 0x4, offset = 0x44, fixed_abs, tag = 'smem constant byte address 0x44 - assertion arg 0']
  #allocation8 [shape = 'u32[]', space=smem, size = 0x4, offset = 0x48, fixed_abs, tag = 'smem constant byte address 0x48 - assertion arg 1']
  %s0 = inlined_call_operand.hbm [shape: f32[6,16,16,128], index: 0, kind: input, shape index: {}]
  %s1 = inlined_call_operand.vmem [shape: f32[6,1,1], index: 1, kind: output, shape index: {}]
  %s2 = sld [smem:[#allocation0]]
  $region29: #{tpu_custom_call.1} parent=0
    _
  %s4 = ssub.s32 1, %s2
  %s5 = scalar_select 0, %s4, %s2
  loop: start=0, step=1, limit=7
  $region2: #{tpu_custom_call.1} parent=0 // loop_pre_header
    _
  $region3: #{tpu_custom_call.1} parent=0 // loop_header
    %s7 = sphi 0, %s11
    %p8 = scmp.ge.s32.totalorder %s7, 7
    %s16 = sphi 0, %s18
    %s19 = sphi 0, %s16
    %s29 = sphi 0, %s19
  $region4: #{tpu_custom_call.1} parent=0 // loop_header_branch
    %10 = sbr.rel (%p8) target = $region8
  $region5: #{tpu_custom_call.1} parent=0 // loop_body
    %s12 = ssub.s32 %s7, 1
    %s13 = sadd.s32 %s7, 1
    %s14 = ssub.s32 %s7, %s13
    %p15 = scmp.eq.s32.totalorder %s14, 0
    %s17 = sadd.s32 %s16, 1
    %s18 = scalar_select %p15, %s16, %s17
    %p20 = pneg %p15
    %p21 = scmp.eq.s32.totalorder %s7, 5
    %p22 = por %p20, %p21
    %p23 = scmp.ne.s32.totalorder %s16, %s19
    %p24 = scmp.eq.s32.totalorder %s7, 0
    %p25 = por %p23, %p24
    %p26 = scmp.ne.s32.totalorder %s16, %s19
    %p27 = scmp.eq.s32.totalorder %s12, 5
    %p28 = por %p26, %p27
    %p30 = scmp.ne.s32.totalorder %s19, %s29
    %p31 = scmp.eq.s32.totalorder %s12, 0
    %p32 = por %p30, %p31
    %p33 = scmp.lt.s32.totalorder %s7, 6
    // Predicated region
    $region9: #{tpu_custom_call.1} parent=5 // pred_check
      %p34 = pneg %p33
    $region10: #{tpu_custom_call.1} parent=5 // pred_check_branch
      %36 = sbr.rel (%p34) target = $region12
    $region11: #{tpu_custom_call.1} parent=5 // pred_region
      %p37 = pneg %p25
      %p38 = pneg %p22
      %p39 = scmp.lt.s32.totalorder %s7, 5
      %s40 = scalar_select %p39, %s7, 5
      %s41 = scalar_lea.vmem %s1, %s40
      %p42 = scmp.lt.s32.totalorder %s7, 5
      %s43 = scalar_select %p42, %s7, 5
      %s44 = scalar_lea.vmem %s1, %s43
      %s45 = smul.u32 %s7, 256
      %s46 = smul.addr %s45, 16
      %s47 = scalar_lea.hbm %s0, %s46
      // Predicated region
      $region13: #{tpu_custom_call.1} parent=11 // pred_check
        _
      $region14: #{tpu_custom_call.1} parent=11 // pred_check_branch
        %49 = sbr.rel target = $region16
      $region15: #{tpu_custom_call.1} parent=11 // pred_region
        %50 = sst [smem:[#allocation7]] [#allocation6]
        %51 = sst [smem:[#allocation8]] [#allocation5]
      $region16: #{tpu_custom_call.1} parent=11 // pred_fallthru
        _
      %53 = shalt.err (0)
      %s55 = sshll.u32 [#allocation2], 4
      %s56 = int_to_ptr.vmem [resolvable:$true] %s55
      %58 = dma.hbm_to_vmem [thread:$0]  %s47, 4096, %s56, [#allocation3]
      %vm59 = vcmask 0
      %60 = vst.msk [vmem:[#allocation4] sm:$0x1] %vm59, 0.0
      %v61 = vlaneseq
      %v62 = vshrl.u32 %v61, 7
      %v63 = vadd.s32 %v62, 8
      %v64 = vlaneseq
      %v65 = vand.u32 %v64, 127
      %vm66 = vcmp.ge.s32.totalorder %v62, 2
      %vm67 = vcmp.ge.s32.totalorder %v63, 2
      %vm68 = vcmp.le.s32.totalorder %v62, 13
      %vm69 = vcmp.le.s32.totalorder %v63, 13
      %vm70 = vmand %vm66, %vm68
      %vm71 = vmand %vm67, %vm69
      %vm72 = vcmp.ge.s32.totalorder %v65, 2
      %vm73 = vmand %vm70, %vm72
      %vm74 = vmand %vm71, %vm72
      %vm75 = vcmp.le.s32.totalorder %v65, 13
      %vm76 = vmand %vm73, %vm75
      %vm77 = vmand %vm74, %vm75
      %s78 = smul.u32 16, 16
      %s79 = smul.u32 %s78, 1
      %s80 = sshll.u32 %s79, 4
      %81 = dma.done [#allocation3], %s80
      %v82 = vld [vmem:[#allocation2] sm:$0xff]
      %v83 = vld [vmem:[#allocation2 + $0x8] sm:$0xff]
      %v84 = vld [vmem:[#allocation2 + $0x10] sm:$0xff]
      %v85 = vld [vmem:[#allocation2 + $0x18] sm:$0xff]
      %v86 = vld [vmem:[#allocation2 + $0x20] sm:$0xff]
      %v87 = vld [vmem:[#allocation2 + $0x28] sm:$0xff]
      %v88 = vld [vmem:[#allocation2 + $0x30] sm:$0xff]
      %v89 = vld [vmem:[#allocation2 + $0x38] sm:$0xff]
      %v90 = vld [vmem:[#allocation2 + $0x40] sm:$0xff]
      %v91 = vld [vmem:[#allocation2 + $0x48] sm:$0xff]
      %v92 = vld [vmem:[#allocation2 + $0x50] sm:$0xff]
      %v93 = vld [vmem:[#allocation2 + $0x58] sm:$0xff]
      %v94 = vld [vmem:[#allocation2 + $0x60] sm:$0xff]
      %v95 = vld [vmem:[#allocation2 + $0x68] sm:$0xff]
      %v96 = vld [vmem:[#allocation2 + $0x70] sm:$0xff]
      %v97 = vld [vmem:[#allocation2 + $0x78] sm:$0xff]
      %v98 = vld [vmem:[#allocation2 + $0x80] sm:$0xff]
      %v99 = vld [vmem:[#allocation2 + $0x88] sm:$0xff]
      %v100 = vld [vmem:[#allocation2 + $0x90] sm:$0xff]
      %v101 = vld [vmem:[#allocation2 + $0x98] sm:$0xff]
      %v102 = vld [vmem:[#allocation2 + $0xa0] sm:$0xff]
      %v103 = vld [vmem:[#allocation2 + $0xa8] sm:$0xff]
      %v104 = vld [vmem:[#allocation2 + $0xb0] sm:$0xff]
      %v105 = vld [vmem:[#allocation2 + $0xb8] sm:$0xff]
      %v106 = vld [vmem:[#allocation2 + $0xc0] sm:$0xff]
      %v107 = vld [vmem:[#allocation2 + $0xc8] sm:$0xff]
      %v108 = vld [vmem:[#allocation2 + $0xd0] sm:$0xff]
      %v109 = vld [vmem:[#allocation2 + $0xd8] sm:$0xff]
      %v110 = vld [vmem:[#allocation2 + $0xe0] sm:$0xff]
      %v111 = vld [vmem:[#allocation2 + $0xe8] sm:$0xff]
      %v112 = vld [vmem:[#allocation2 + $0xf0] sm:$0xff]
      %v113 = vld [vmem:[#allocation2 + $0xf8] sm:$0xff]
      %vm114 = vmand %vm76, 1
      %vm115 = vmand %vm77, 1
      %v116 = vsub.f32 %v86, %v82
      %v117 = vsub.f32 %v87, %v83
      %v118 = vsub.f32 %v88, %v84
      %v119 = vsub.f32 %v89, %v85
      %v120 = vsub.f32 %v90, %v86
      %v121 = vsub.f32 %v91, %v87
      %v122 = vsub.f32 %v92, %v88
      %v123 = vsub.f32 %v93, %v89
      %v124 = vsub.f32 %v94, %v90
      %v125 = vsub.f32 %v95, %v91
      %v126 = vsub.f32 %v96, %v92
      %v127 = vsub.f32 %v97, %v93
      %v128 = vsub.f32 %v98, %v94
      %v129 = vsub.f32 %v99, %v95
      %v130 = vsub.f32 %v100, %v96
      %v131 = vsub.f32 %v101, %v97
      %v132 = vsub.f32 %v102, %v98
      %v133 = vsub.f32 %v103, %v99
      %v134 = vsub.f32 %v104, %v100
      %v135 = vsub.f32 %v105, %v101
      %v136 = vsub.f32 %v106, %v102
      %v137 = vsub.f32 %v107, %v103
      %v138 = vsub.f32 %v108, %v104
      %v139 = vsub.f32 %v109, %v105
      %v140 = vsub.f32 %v110, %v106
      %v141 = vsub.f32 %v111, %v107
      %v142 = vsub.f32 %v112, %v108
      %v143 = vsub.f32 %v113, %v109
      %v144 = vmul.f32 %v116, 0.5
      %v145 = vmul.f32 %v117, 0.5
      %v146 = vmul.f32 %v118, 0.5
      %v147 = vmul.f32 %v119, 0.5
      %v148 = vmul.f32 %v120, 0.5
      %v149 = vmul.f32 %v121, 0.5
      %v150 = vmul.f32 %v122, 0.5
      %v151 = vmul.f32 %v123, 0.5
      %v152 = vmul.f32 %v124, 0.5
      %v153 = vmul.f32 %v125, 0.5
      %v154 = vmul.f32 %v126, 0.5
      %v155 = vmul.f32 %v127, 0.5
      %v156 = vmul.f32 %v128, 0.5
      %v157 = vmul.f32 %v129, 0.5
      %v158 = vmul.f32 %v130, 0.5
      %v159 = vmul.f32 %v131, 0.5
      %v160 = vmul.f32 %v132, 0.5
      %v161 = vmul.f32 %v133, 0.5
      %v162 = vmul.f32 %v134, 0.5
      %v163 = vmul.f32 %v135, 0.5
      %v164 = vmul.f32 %v136, 0.5
      %v165 = vmul.f32 %v137, 0.5
      %v166 = vmul.f32 %v138, 0.5
      %v167 = vmul.f32 %v139, 0.5
      %v168 = vmul.f32 %v140, 0.5
      %v169 = vmul.f32 %v141, 0.5
      %v170 = vmul.f32 %v142, 0.5
      %v171 = vmul.f32 %v143, 0.5
      %v172 = vrot.slane %v86, 7
      %v173 = vrot.slane %v88, 7
      %v174 = vrot.slane %v90, 7
      %v175 = vrot.slane %v92, 7
      %v176 = vrot.slane %v94, 7
      %v177 = vrot.slane %v96, 7
      %v178 = vrot.slane %v98, 7
      %v179 = vrot.slane %v100, 7
      %v180 = vrot.slane %v102, 7
      %v181 = vrot.slane %v104, 7
      %v182 = vrot.slane %v106, 7
      %v183 = vrot.slane %v108, 7
      %v184 = vrot.slane %v87, 7
      %v185 = vrot.slane %v89, 7
      %v186 = vrot.slane %v91, 7
      %v187 = vrot.slane %v93, 7
      %v188 = vrot.slane %v95, 7
      %v189 = vrot.slane %v97, 7
      %v190 = vrot.slane %v99, 7
      %v191 = vrot.slane %v101, 7
      %v192 = vrot.slane %v103, 7
      %v193 = vrot.slane %v105, 7
      %v194 = vrot.slane %v107, 7
      %v195 = vrot.slane %v109, 7
      %vm196 = vcmp.lt.s32.totalorder %v62, 1
      %v197 = vsel %vm196, %v172, %v184
      %v198 = vsel %vm196, %v173, %v185
      %v199 = vsel %vm196, %v174, %v186
      %v200 = vsel %vm196, %v175, %v187
      %v201 = vsel %vm196, %v176, %v188
      %v202 = vsel %vm196, %v177, %v189
      %v203 = vsel %vm196, %v178, %v190
      %v204 = vsel %vm196, %v179, %v191
      %v205 = vsel %vm196, %v180, %v192
      %v206 = vsel %vm196, %v181, %v193
      %v207 = vsel %vm196, %v182, %v194
      %v208 = vsel %vm196, %v183, %v195
      %v209 = vsel %vm196, %v184, %v172
      %v210 = vsel %vm196, %v185, %v173
      %v211 = vsel %vm196, %v186, %v174
      %v212 = vsel %vm196, %v187, %v175
      %v213 = vsel %vm196, %v188, %v176
      %v214 = vsel %vm196, %v189, %v177
      %v215 = vsel %vm196, %v190, %v178
      %v216 = vsel %vm196, %v191, %v179
      %v217 = vsel %vm196, %v192, %v180
      %v218 = vsel %vm196, %v193, %v181
      %v219 = vsel %vm196, %v194, %v182
      %v220 = vsel %vm196, %v195, %v183
      %v221 = vrot.slane %v86, 1
      %v222 = vrot.slane %v88, 1
      %v223 = vrot.slane %v90, 1
      %v224 = vrot.slane %v92, 1
      %v225 = vrot.slane %v94, 1
      %v226 = vrot.slane %v96, 1
      %v227 = vrot.slane %v98, 1
      %v228 = vrot.slane %v100, 1
      %v229 = vrot.slane %v102, 1
      %v230 = vrot.slane %v104, 1
      %v231 = vrot.slane %v106, 1
      %v232 = vrot.slane %v108, 1
      %v233 = vrot.slane %v87, 1
      %v234 = vrot.slane %v89, 1
      %v235 = vrot.slane %v91, 1
      %v236 = vrot.slane %v93, 1
      %v237 = vrot.slane %v95, 1
      %v238 = vrot.slane %v97, 1
      %v239 = vrot.slane %v99, 1
      %v240 = vrot.slane %v101, 1
      %v241 = vrot.slane %v103, 1
      %v242 = vrot.slane %v105, 1
      %v243 = vrot.slane %v107, 1
      %v244 = vrot.slane %v109, 1
      %vm245 = vcmp.lt.s32.totalorder %v62, 7
      %v246 = vsel %vm245, %v221, %v233
      %v247 = vsel %vm245, %v222, %v234
      %v248 = vsel %vm245, %v223, %v235
      %v249 = vsel %vm245, %v224, %v236
      %v250 = vsel %vm245, %v225, %v237
      %v251 = vsel %vm245, %v226, %v238
      %v252 = vsel %vm245, %v227, %v239
      %v253 = vsel %vm245, %v228, %v240
      %v254 = vsel %vm245, %v229, %v241
      %v255 = vsel %vm245, %v230, %v242
      %v256 = vsel %vm245, %v231, %v243
      %v257 = vsel %vm245, %v232, %v244
      %v258 = vsel %vm245, %v233, %v221
      %v259 = vsel %vm245, %v234, %v222
      %v260 = vsel %vm245, %v235, %v223
      %v261 = vsel %vm245, %v236, %v224
      %v262 = vsel %vm245, %v237, %v225
      %v263 = vsel %vm245, %v238, %v226
      %v264 = vsel %vm245, %v239, %v227
      %v265 = vsel %vm245, %v240, %v228
      %v266 = vsel %vm245, %v241, %v229
      %v267 = vsel %vm245, %v242, %v230
      %v268 = vsel %vm245, %v243, %v231
      %v269 = vsel %vm245, %v244, %v232
      %v270 = vsub.f32 %v209, %v246
      %v271 = vsub.f32 %v197, %v258
      %v272 = vsub.f32 %v210, %v247
      %v273 = vsub.f32 %v198, %v259
      %v274 = vsub.f32 %v211, %v248
      %v275 = vsub.f32 %v199, %v260
      %v276 = vsub.f32 %v212, %v249
      %v277 = vsub.f32 %v200, %v261
      %v278 = vsub.f32 %v213, %v250
      %v279 = vsub.f32 %v201, %v262
      %v280 = vsub.f32 %v214, %v251
      %v281 = vsub.f32 %v202, %v263
      %v282 = vsub.f32 %v215, %v252
      %v283 = vsub.f32 %v203, %v264
      %v284 = vsub.f32 %v216, %v253
      %v285 = vsub.f32 %v204, %v265
      %v286 = vsub.f32 %v217, %v254
      %v287 = vsub.f32 %v205, %v266
      %v288 = vsub.f32 %v218, %v255
      %v289 = vsub.f32 %v206, %v267
      %v290 = vsub.f32 %v219, %v256
      %v291 = vsub.f32 %v207, %v268
      %v292 = vsub.f32 %v220, %v257
      %v293 = vsub.f32 %v208, %v269
      %v294 = vmul.f32 %v270, 0.5
      %v295 = vmul.f32 %v271, 0.5
      %v296 = vmul.f32 %v272, 0.5
      %v297 = vmul.f32 %v273, 0.5
      %v298 = vmul.f32 %v274, 0.5
      %v299 = vmul.f32 %v275, 0.5
      %v300 = vmul.f32 %v276, 0.5
      %v301 = vmul.f32 %v277, 0.5
      %v302 = vmul.f32 %v278, 0.5
      %v303 = vmul.f32 %v279, 0.5
      %v304 = vmul.f32 %v280, 0.5
      %v305 = vmul.f32 %v281, 0.5
      %v306 = vmul.f32 %v282, 0.5
      %v307 = vmul.f32 %v283, 0.5
      %v308 = vmul.f32 %v284, 0.5
      %v309 = vmul.f32 %v285, 0.5
      %v310 = vmul.f32 %v286, 0.5
      %v311 = vmul.f32 %v287, 0.5
      %v312 = vmul.f32 %v288, 0.5
      %v313 = vmul.f32 %v289, 0.5
      %v314 = vmul.f32 %v290, 0.5
      %v315 = vmul.f32 %v291, 0.5
      %v316 = vmul.f32 %v292, 0.5
      %v317 = vmul.f32 %v293, 0.5
      %318 = vrot.lane.b32.xlu0 %v86, 1
      %v319 = vpop.permute.xlu0 %318
      %320 = vrot.lane.b32.xlu0 %v87, 1
      %v321 = vpop.permute.xlu0 %320
      %322 = vrot.lane.b32.xlu0 %v88, 1
      %v323 = vpop.permute.xlu0 %322
      %324 = vrot.lane.b32.xlu0 %v89, 1
      %v325 = vpop.permute.xlu0 %324
      %326 = vrot.lane.b32.xlu0 %v90, 1
      %v327 = vpop.permute.xlu0 %326
      %328 = vrot.lane.b32.xlu0 %v91, 1
      %v329 = vpop.permute.xlu0 %328
      %330 = vrot.lane.b32.xlu0 %v92, 1
      %v331 = vpop.permute.xlu0 %330
      %332 = vrot.lane.b32.xlu0 %v93, 1
      %v333 = vpop.permute.xlu0 %332
      %334 = vrot.lane.b32.xlu0 %v94, 1
      %v335 = vpop.permute.xlu0 %334
      %336 = vrot.lane.b32.xlu0 %v95, 1
      %v337 = vpop.permute.xlu0 %336
      %338 = vrot.lane.b32.xlu0 %v96, 1
      %v339 = vpop.permute.xlu0 %338
      %340 = vrot.lane.b32.xlu0 %v97, 1
      %v341 = vpop.permute.xlu0 %340
      %342 = vrot.lane.b32.xlu0 %v98, 1
      %v343 = vpop.permute.xlu0 %342
      %344 = vrot.lane.b32.xlu0 %v99, 1
      %v345 = vpop.permute.xlu0 %344
      %346 = vrot.lane.b32.xlu0 %v100, 1
      %v347 = vpop.permute.xlu0 %346
      %348 = vrot.lane.b32.xlu0 %v101, 1
      %v349 = vpop.permute.xlu0 %348
      %350 = vrot.lane.b32.xlu0 %v102, 1
      %v351 = vpop.permute.xlu0 %350
      %352 = vrot.lane.b32.xlu0 %v103, 1
      %v353 = vpop.permute.xlu0 %352
      %354 = vrot.lane.b32.xlu0 %v104, 1
      %v355 = vpop.permute.xlu0 %354
      %356 = vrot.lane.b32.xlu0 %v105, 1
      %v357 = vpop.permute.xlu0 %356
      %358 = vrot.lane.b32.xlu0 %v106, 1
      %v359 = vpop.permute.xlu0 %358
      %360 = vrot.lane.b32.xlu0 %v107, 1
      %v361 = vpop.permute.xlu0 %360
      %362 = vrot.lane.b32.xlu0 %v108, 1
      %v363 = vpop.permute.xlu0 %362
      %364 = vrot.lane.b32.xlu0 %v109, 1
      %v365 = vpop.permute.xlu0 %364
      %366 = vrot.lane.b32.xlu0 %v86, 127
      %v367 = vpop.permute.xlu0 %366
      %368 = vrot.lane.b32.xlu0 %v87, 127
      %v369 = vpop.permute.xlu0 %368
      %370 = vrot.lane.b32.xlu0 %v88, 127
      %v371 = vpop.permute.xlu0 %370
      %372 = vrot.lane.b32.xlu0 %v89, 127
      %v373 = vpop.permute.xlu0 %372
      %374 = vrot.lane.b32.xlu0 %v90, 127
      %v375 = vpop.permute.xlu0 %374
      %376 = vrot.lane.b32.xlu0 %v91, 127
      %v377 = vpop.permute.xlu0 %376
      %378 = vrot.lane.b32.xlu0 %v92, 127
      %v379 = vpop.permute.xlu0 %378
      %380 = vrot.lane.b32.xlu0 %v93, 127
      %v381 = vpop.permute.xlu0 %380
      %382 = vrot.lane.b32.xlu0 %v94, 127
      %v383 = vpop.permute.xlu0 %382
      %384 = vrot.lane.b32.xlu0 %v95, 127
      %v385 = vpop.permute.xlu0 %384
      %386 = vrot.lane.b32.xlu0 %v96, 127
      %v387 = vpop.permute.xlu0 %386
      %388 = vrot.lane.b32.xlu0 %v97, 127
      %v389 = vpop.permute.xlu0 %388
      %390 = vrot.lane.b32.xlu0 %v98, 127
      %v391 = vpop.permute.xlu0 %390
      %392 = vrot.lane.b32.xlu0 %v99, 127
      %v393 = vpop.permute.xlu0 %392
      %394 = vrot.lane.b32.xlu0 %v100, 127
      %v395 = vpop.permute.xlu0 %394
      %396 = vrot.lane.b32.xlu0 %v101, 127
      %v397 = vpop.permute.xlu0 %396
      %398 = vrot.lane.b32.xlu0 %v102, 127
      %v399 = vpop.permute.xlu0 %398
      %400 = vrot.lane.b32.xlu0 %v103, 127
      %v401 = vpop.permute.xlu0 %400
      %402 = vrot.lane.b32.xlu0 %v104, 127
      %v403 = vpop.permute.xlu0 %402
      %404 = vrot.lane.b32.xlu0 %v105, 127
      %v405 = vpop.permute.xlu0 %404
      %406 = vrot.lane.b32.xlu0 %v106, 127
      %v407 = vpop.permute.xlu0 %406
      %408 = vrot.lane.b32.xlu0 %v107, 127
      %v409 = vpop.permute.xlu0 %408
      %410 = vrot.lane.b32.xlu0 %v108, 127
      %v411 = vpop.permute.xlu0 %410
      %412 = vrot.lane.b32.xlu0 %v109, 127
      %v413 = vpop.permute.xlu0 %412
      %v414 = vsub.f32 %v319, %v367
      %v415 = vsub.f32 %v321, %v369
      %v416 = vsub.f32 %v323, %v371
      %v417 = vsub.f32 %v325, %v373
      %v418 = vsub.f32 %v327, %v375
      %v419 = vsub.f32 %v329, %v377
      %v420 = vsub.f32 %v331, %v379
      %v421 = vsub.f32 %v333, %v381
      %v422 = vsub.f32 %v335, %v383
      %v423 = vsub.f32 %v337, %v385
      %v424 = vsub.f32 %v339, %v387
      %v425 = vsub.f32 %v341, %v389
      %v426 = vsub.f32 %v343, %v391
      %v427 = vsub.f32 %v345, %v393
      %v428 = vsub.f32 %v347, %v395
      %v429 = vsub.f32 %v349, %v397
      %v430 = vsub.f32 %v351, %v399
      %v431 = vsub.f32 %v353, %v401
      %v432 = vsub.f32 %v355, %v403
      %v433 = vsub.f32 %v357, %v405
      %v434 = vsub.f32 %v359, %v407
      %v435 = vsub.f32 %v361, %v409
      %v436 = vsub.f32 %v363, %v411
      %v437 = vsub.f32 %v365, %v413
      %v438 = vmul.f32 %v414, 0.5
      %v439 = vmul.f32 %v415, 0.5
      %v440 = vmul.f32 %v416, 0.5
      %v441 = vmul.f32 %v417, 0.5
      %v442 = vmul.f32 %v418, 0.5
      %v443 = vmul.f32 %v419, 0.5
      %v444 = vmul.f32 %v420, 0.5
      %v445 = vmul.f32 %v421, 0.5
      %v446 = vmul.f32 %v422, 0.5
      %v447 = vmul.f32 %v423, 0.5
      %v448 = vmul.f32 %v424, 0.5
      %v449 = vmul.f32 %v425, 0.5
      %v450 = vmul.f32 %v426, 0.5
      %v451 = vmul.f32 %v427, 0.5
      %v452 = vmul.f32 %v428, 0.5
      %v453 = vmul.f32 %v429, 0.5
      %v454 = vmul.f32 %v430, 0.5
      %v455 = vmul.f32 %v431, 0.5
      %v456 = vmul.f32 %v432, 0.5
      %v457 = vmul.f32 %v433, 0.5
      %v458 = vmul.f32 %v434, 0.5
      %v459 = vmul.f32 %v435, 0.5
      %v460 = vmul.f32 %v436, 0.5
      %v461 = vmul.f32 %v437, 0.5
      %v462 = vsub.f32 %v148, %v144
      %v463 = vsub.f32 %v149, %v145
      %v464 = vsub.f32 %v150, %v146
      %v465 = vsub.f32 %v151, %v147
      %v466 = vsub.f32 %v152, %v148
      %v467 = vsub.f32 %v153, %v149
      %v468 = vsub.f32 %v154, %v150
      %v469 = vsub.f32 %v155, %v151
      %v470 = vsub.f32 %v156, %v152
      %v471 = vsub.f32 %v157, %v153
      %v472 = vsub.f32 %v158, %v154
      %v473 = vsub.f32 %v159, %v155
      %v474 = vsub.f32 %v160, %v156
      %v475 = vsub.f32 %v161, %v157
      %v476 = vsub.f32 %v162, %v158
      %v477 = vsub.f32 %v163, %v159
      %v478 = vsub.f32 %v164, %v160
      %v479 = vsub.f32 %v165, %v161
      %v480 = vsub.f32 %v166, %v162
      %v481 = vsub.f32 %v167, %v163
      %v482 = vsub.f32 %v168, %v164
      %v483 = vsub.f32 %v169, %v165
      %v484 = vsub.f32 %v170, %v166
      %v485 = vsub.f32 %v171, %v167
      %v486 = vmul.f32 %v462, 0.5
      %v487 = vmul.f32 %v463, 0.5
      %v488 = vmul.f32 %v464, 0.5
      %v489 = vmul.f32 %v465, 0.5
      %v490 = vmul.f32 %v466, 0.5
      %v491 = vmul.f32 %v467, 0.5
      %v492 = vmul.f32 %v468, 0.5
      %v493 = vmul.f32 %v469, 0.5
      %v494 = vmul.f32 %v470, 0.5
      %v495 = vmul.f32 %v471, 0.5
      %v496 = vmul.f32 %v472, 0.5
      %v497 = vmul.f32 %v473, 0.5
      %v498 = vmul.f32 %v474, 0.5
      %v499 = vmul.f32 %v475, 0.5
      %v500 = vmul.f32 %v476, 0.5
      %v501 = vmul.f32 %v477, 0.5
      %v502 = vmul.f32 %v478, 0.5
      %v503 = vmul.f32 %v479, 0.5
      %v504 = vmul.f32 %v480, 0.5
      %v505 = vmul.f32 %v481, 0.5
      %v506 = vmul.f32 %v482, 0.5
      %v507 = vmul.f32 %v483, 0.5
      %v508 = vmul.f32 %v484, 0.5
      %v509 = vmul.f32 %v485, 0.5
      %v510 = vmul.f32 %v486, %v486
      %v511 = vmul.f32 %v487, %v487
      %v512 = vmul.f32 %v488, %v488
      %v513 = vmul.f32 %v489, %v489
      %v514 = vmul.f32 %v490, %v490
      %v515 = vmul.f32 %v491, %v491
      %v516 = vmul.f32 %v492, %v492
      %v517 = vmul.f32 %v493, %v493
      %v518 = vmul.f32 %v494, %v494
      %v519 = vmul.f32 %v495, %v495
      %v520 = vmul.f32 %v496, %v496
      %v521 = vmul.f32 %v497, %v497
      %v522 = vmul.f32 %v498, %v498
      %v523 = vmul.f32 %v499, %v499
      %v524 = vmul.f32 %v500, %v500
      %v525 = vmul.f32 %v501, %v501
      %v526 = vmul.f32 %v502, %v502
      %v527 = vmul.f32 %v503, %v503
      %v528 = vmul.f32 %v504, %v504
      %v529 = vmul.f32 %v505, %v505
      %v530 = vmul.f32 %v506, %v506
      %v531 = vmul.f32 %v507, %v507
      %v532 = vmul.f32 %v508, %v508
      %v533 = vmul.f32 %v509, %v509
      %v534 = vsel %vm114, %v510, 0.0
      %v535 = vsel %vm115, %v511, 0.0
      %v536 = vsel %vm114, %v512, 0.0
      %v537 = vsel %vm115, %v513, 0.0
      %v538 = vsel %vm114, %v514, 0.0
      %v539 = vsel %vm115, %v515, 0.0
      %v540 = vsel %vm114, %v516, 0.0
      %v541 = vsel %vm115, %v517, 0.0
      %v542 = vsel %vm114, %v518, 0.0
      %v543 = vsel %vm115, %v519, 0.0
      %v544 = vsel %vm114, %v520, 0.0
      %v545 = vsel %vm115, %v521, 0.0
      %v546 = vsel %vm114, %v522, 0.0
      %v547 = vsel %vm115, %v523, 0.0
      %v548 = vsel %vm114, %v524, 0.0
      %v549 = vsel %vm115, %v525, 0.0
      %v550 = vsel %vm114, %v526, 0.0
      %v551 = vsel %vm115, %v527, 0.0
      %v552 = vsel %vm114, %v528, 0.0
      %v553 = vsel %vm115, %v529, 0.0
      %v554 = vsel %vm114, %v530, 0.0
      %v555 = vsel %vm115, %v531, 0.0
      %v556 = vsel %vm114, %v532, 0.0
      %v557 = vsel %vm115, %v533, 0.0
      %v558 = vrot.slane %v294, 7
      %v559 = vrot.slane %v296, 7
      %v560 = vrot.slane %v298, 7
      %v561 = vrot.slane %v300, 7
      %v562 = vrot.slane %v302, 7
      %v563 = vrot.slane %v304, 7
      %v564 = vrot.slane %v306, 7
      %v565 = vrot.slane %v308, 7
      %v566 = vrot.slane %v310, 7
      %v567 = vrot.slane %v312, 7
      %v568 = vrot.slane %v314, 7
      %v569 = vrot.slane %v316, 7
      %v570 = vrot.slane %v295, 7
      %v571 = vrot.slane %v297, 7
      %v572 = vrot.slane %v299, 7
      %v573 = vrot.slane %v301, 7
      %v574 = vrot.slane %v303, 7
      %v575 = vrot.slane %v305, 7
      %v576 = vrot.slane %v307, 7
      %v577 = vrot.slane %v309, 7
      %v578 = vrot.slane %v311, 7
      %v579 = vrot.slane %v313, 7
      %v580 = vrot.slane %v315, 7
      %v581 = vrot.slane %v317, 7
      %v582 = vsel %vm196, %v558, %v570
      %v583 = vsel %vm196, %v559, %v571
      %v584 = vsel %vm196, %v560, %v572
      %v585 = vsel %vm196, %v561, %v573
      %v586 = vsel %vm196, %v562, %v574
      %v587 = vsel %vm196, %v563, %v575
      %v588 = vsel %vm196, %v564, %v576
      %v589 = vsel %vm196, %v565, %v577
      %v590 = vsel %vm196, %v566, %v578
      %v591 = vsel %vm196, %v567, %v579
      %v592 = vsel %vm196, %v568, %v580
      %v593 = vsel %vm196, %v569, %v581
      %v594 = vsel %vm196, %v570, %v558
      %v595 = vsel %vm196, %v571, %v559
      %v596 = vsel %vm196, %v572, %v560
      %v597 = vsel %vm196, %v573, %v561
      %v598 = vsel %vm196, %v574, %v562
      %v599 = vsel %vm196, %v575, %v563
      %v600 = vsel %vm196, %v576, %v564
      %v601 = vsel %vm196, %v577, %v565
      %v602 = vsel %vm196, %v578, %v566
      %v603 = vsel %vm196, %v579, %v567
      %v604 = vsel %vm196, %v580, %v568
      %v605 = vsel %vm196, %v581, %v569
      %v606 = vrot.slane %v294, 1
      %v607 = vrot.slane %v296, 1
      %v608 = vrot.slane %v298, 1
      %v609 = vrot.slane %v300, 1
      %v610 = vrot.slane %v302, 1
      %v611 = vrot.slane %v304, 1
      %v612 = vrot.slane %v306, 1
      %v613 = vrot.slane %v308, 1
      %v614 = vrot.slane %v310, 1
      %v615 = vrot.slane %v312, 1
      %v616 = vrot.slane %v314, 1
      %v617 = vrot.slane %v316, 1
      %v618 = vrot.slane %v295, 1
      %v619 = vrot.slane %v297, 1
      %v620 = vrot.slane %v299, 1
      %v621 = vrot.slane %v301, 1
      %v622 = vrot.slane %v303, 1
      %v623 = vrot.slane %v305, 1
      %v624 = vrot.slane %v307, 1
      %v625 = vrot.slane %v309, 1
      %v626 = vrot.slane %v311, 1
      %v627 = vrot.slane %v313, 1
      %v628 = vrot.slane %v315, 1
      %v629 = vrot.slane %v317, 1
      %v630 = vsel %vm245, %v606, %v618
      %v631 = vsel %vm245, %v607, %v619
      %v632 = vsel %vm245, %v608, %v620
      %v633 = vsel %vm245, %v609, %v621
      %v634 = vsel %vm245, %v610, %v622
      %v635 = vsel %vm245, %v611, %v623
      %v636 = vsel %vm245, %v612, %v624
      %v637 = vsel %vm245, %v613, %v625
      %v638 = vsel %vm245, %v614, %v626
      %v639 = vsel %vm245, %v615, %v627
      %v640 = vsel %vm245, %v616, %v628
      %v641 = vsel %vm245, %v617, %v629
      %v642 = vsel %vm245, %v618, %v606
      %v643 = vsel %vm245, %v619, %v607
      %v644 = vsel %vm245, %v620, %v608
      %v645 = vsel %vm245, %v621, %v609
      %v646 = vsel %vm245, %v622, %v610
      %v647 = vsel %vm245, %v623, %v611
      %v648 = vsel %vm245, %v624, %v612
      %v649 = vsel %vm245, %v625, %v613
      %v650 = vsel %vm245, %v626, %v614
      %v651 = vsel %vm245, %v627, %v615
      %v652 = vsel %vm245, %v628, %v616
      %v653 = vsel %vm245, %v629, %v617
      %v654 = vsub.f32 %v594, %v630
      %v655 = vsub.f32 %v582, %v642
      %v656 = vsub.f32 %v595, %v631
      %v657 = vsub.f32 %v583, %v643
      %v658 = vsub.f32 %v596, %v632
      %v659 = vsub.f32 %v584, %v644
      %v660 = vsub.f32 %v597, %v633
      %v661 = vsub.f32 %v585, %v645
      %v662 = vsub.f32 %v598, %v634
      %v663 = vsub.f32 %v586, %v646
      %v664 = vsub.f32 %v599, %v635
      %v665 = vsub.f32 %v587, %v647
      %v666 = vsub.f32 %v600, %v636
      %v667 = vsub.f32 %v588, %v648
      %v668 = vsub.f32 %v601, %v637
      %v669 = vsub.f32 %v589, %v649
      %v670 = vsub.f32 %v602, %v638
      %v671 = vsub.f32 %v590, %v650
      %v672 = vsub.f32 %v603, %v639
      %v673 = vsub.f32 %v591, %v651
      %v674 = vsub.f32 %v604, %v640
      %v675 = vsub.f32 %v592, %v652
      %v676 = vsub.f32 %v605, %v641
      %v677 = vsub.f32 %v593, %v653
      %v678 = vmul.f32 %v654, 0.5
      %v679 = vmul.f32 %v655, 0.5
      %v680 = vmul.f32 %v656, 0.5
      %v681 = vmul.f32 %v657, 0.5
      %v682 = vmul.f32 %v658, 0.5
      %v683 = vmul.f32 %v659, 0.5
      %v684 = vmul.f32 %v660, 0.5
      %v685 = vmul.f32 %v661, 0.5
      %v686 = vmul.f32 %v662, 0.5
      %v687 = vmul.f32 %v663, 0.5
      %v688 = vmul.f32 %v664, 0.5
      %v689 = vmul.f32 %v665, 0.5
      %v690 = vmul.f32 %v666, 0.5
      %v691 = vmul.f32 %v667, 0.5
      %v692 = vmul.f32 %v668, 0.5
      %v693 = vmul.f32 %v669, 0.5
      %v694 = vmul.f32 %v670, 0.5
      %v695 = vmul.f32 %v671, 0.5
      %v696 = vmul.f32 %v672, 0.5
      %v697 = vmul.f32 %v673, 0.5
      %v698 = vmul.f32 %v674, 0.5
      %v699 = vmul.f32 %v675, 0.5
      %v700 = vmul.f32 %v676, 0.5
      %v701 = vmul.f32 %v677, 0.5
      %v702 = vmul.f32 %v678, %v678
      %v703 = vmul.f32 %v679, %v679
      %v704 = vmul.f32 %v680, %v680
      %v705 = vmul.f32 %v681, %v681
      %v706 = vmul.f32 %v682, %v682
      %v707 = vmul.f32 %v683, %v683
      %v708 = vmul.f32 %v684, %v684
      %v709 = vmul.f32 %v685, %v685
      %v710 = vmul.f32 %v686, %v686
      %v711 = vmul.f32 %v687, %v687
      %v712 = vmul.f32 %v688, %v688
      %v713 = vmul.f32 %v689, %v689
      %v714 = vmul.f32 %v690, %v690
      %v715 = vmul.f32 %v691, %v691
      %v716 = vmul.f32 %v692, %v692
      %v717 = vmul.f32 %v693, %v693
      %v718 = vmul.f32 %v694, %v694
      %v719 = vmul.f32 %v695, %v695
      %v720 = vmul.f32 %v696, %v696
      %v721 = vmul.f32 %v697, %v697
      %v722 = vmul.f32 %v698, %v698
      %v723 = vmul.f32 %v699, %v699
      %v724 = vmul.f32 %v700, %v700
      %v725 = vmul.f32 %v701, %v701
      %v726 = vsel %vm114, %v702, 0.0
      %v727 = vsel %vm115, %v703, 0.0
      %v728 = vsel %vm114, %v704, 0.0
      %v729 = vsel %vm115, %v705, 0.0
      %v730 = vsel %vm114, %v706, 0.0
      %v731 = vsel %vm115, %v707, 0.0
      %v732 = vsel %vm114, %v708, 0.0
      %v733 = vsel %vm115, %v709, 0.0
      %v734 = vsel %vm114, %v710, 0.0
      %v735 = vsel %vm115, %v711, 0.0
      %v736 = vsel %vm114, %v712, 0.0
      %v737 = vsel %vm115, %v713, 0.0
      %v738 = vsel %vm114, %v714, 0.0
      %v739 = vsel %vm115, %v715, 0.0
      %v740 = vsel %vm114, %v716, 0.0
      %v741 = vsel %vm115, %v717, 0.0
      %v742 = vsel %vm114, %v718, 0.0
      %v743 = vsel %vm115, %v719, 0.0
      %v744 = vsel %vm114, %v720, 0.0
      %v745 = vsel %vm115, %v721, 0.0
      %v746 = vsel %vm114, %v722, 0.0
      %v747 = vsel %vm115, %v723, 0.0
      %v748 = vsel %vm114, %v724, 0.0
      %v749 = vsel %vm115, %v725, 0.0
      %v750 = vadd.f32 %v534, %v726
      %v751 = vadd.f32 %v535, %v727
      %v752 = vadd.f32 %v536, %v728
      %v753 = vadd.f32 %v537, %v729
      %v754 = vadd.f32 %v538, %v730
      %v755 = vadd.f32 %v539, %v731
      %v756 = vadd.f32 %v540, %v732
      %v757 = vadd.f32 %v541, %v733
      %v758 = vadd.f32 %v542, %v734
      %v759 = vadd.f32 %v543, %v735
      %v760 = vadd.f32 %v544, %v736
      %v761 = vadd.f32 %v545, %v737
      %v762 = vadd.f32 %v546, %v738
      %v763 = vadd.f32 %v547, %v739
      %v764 = vadd.f32 %v548, %v740
      %v765 = vadd.f32 %v549, %v741
      %v766 = vadd.f32 %v550, %v742
      %v767 = vadd.f32 %v551, %v743
      %v768 = vadd.f32 %v552, %v744
      %v769 = vadd.f32 %v553, %v745
      %v770 = vadd.f32 %v554, %v746
      %v771 = vadd.f32 %v555, %v747
      %v772 = vadd.f32 %v556, %v748
      %v773 = vadd.f32 %v557, %v749
      %774 = vrot.lane.b32.xlu0 %v438, 1
      %v775 = vpop.permute.xlu0 %774
      %776 = vrot.lane.b32.xlu0 %v439, 1
      %v777 = vpop.permute.xlu0 %776
      %778 = vrot.lane.b32.xlu0 %v440, 1
      %v779 = vpop.permute.xlu0 %778
      %780 = vrot.lane.b32.xlu0 %v441, 1
      %v781 = vpop.permute.xlu0 %780
      %782 = vrot.lane.b32.xlu0 %v442, 1
      %v783 = vpop.permute.xlu0 %782
      %784 = vrot.lane.b32.xlu0 %v443, 1
      %v785 = vpop.permute.xlu0 %784
      %786 = vrot.lane.b32.xlu0 %v444, 1
      %v787 = vpop.permute.xlu0 %786
      %788 = vrot.lane.b32.xlu0 %v445, 1
      %v789 = vpop.permute.xlu0 %788
      %790 = vrot.lane.b32.xlu0 %v446, 1
      %v791 = vpop.permute.xlu0 %790
      %792 = vrot.lane.b32.xlu0 %v447, 1
      %v793 = vpop.permute.xlu0 %792
      %794 = vrot.lane.b32.xlu0 %v448, 1
      %v795 = vpop.permute.xlu0 %794
      %796 = vrot.lane.b32.xlu0 %v449, 1
      %v797 = vpop.permute.xlu0 %796
      %798 = vrot.lane.b32.xlu0 %v450, 1
      %v799 = vpop.permute.xlu0 %798
      %800 = vrot.lane.b32.xlu0 %v451, 1
      %v801 = vpop.permute.xlu0 %800
      %802 = vrot.lane.b32.xlu0 %v452, 1
      %v803 = vpop.permute.xlu0 %802
      %804 = vrot.lane.b32.xlu0 %v453, 1
      %v805 = vpop.permute.xlu0 %804
      %806 = vrot.lane.b32.xlu0 %v454, 1
      %v807 = vpop.permute.xlu0 %806
      %808 = vrot.lane.b32.xlu0 %v455, 1
      %v809 = vpop.permute.xlu0 %808
      %810 = vrot.lane.b32.xlu0 %v456, 1
      %v811 = vpop.permute.xlu0 %810
      %812 = vrot.lane.b32.xlu0 %v457, 1
      %v813 = vpop.permute.xlu0 %812
      %814 = vrot.lane.b32.xlu0 %v458, 1
      %v815 = vpop.permute.xlu0 %814
      %816 = vrot.lane.b32.xlu0 %v459, 1
      %v817 = vpop.permute.xlu0 %816
      %818 = vrot.lane.b32.xlu0 %v460, 1
      %v819 = vpop.permute.xlu0 %818
      %820 = vrot.lane.b32.xlu0 %v461, 1
      %v821 = vpop.permute.xlu0 %820
      %822 = vrot.lane.b32.xlu0 %v438, 127
      %v823 = vpop.permute.xlu0 %822
      %824 = vrot.lane.b32.xlu0 %v439, 127
      %v825 = vpop.permute.xlu0 %824
      %826 = vrot.lane.b32.xlu0 %v440, 127
      %v827 = vpop.permute.xlu0 %826
      %828 = vrot.lane.b32.xlu0 %v441, 127
      %v829 = vpop.permute.xlu0 %828
      %830 = vrot.lane.b32.xlu0 %v442, 127
      %v831 = vpop.permute.xlu0 %830
      %832 = vrot.lane.b32.xlu0 %v443, 127
      %v833 = vpop.permute.xlu0 %832
      %834 = vrot.lane.b32.xlu0 %v444, 127
      %v835 = vpop.permute.xlu0 %834
      %836 = vrot.lane.b32.xlu0 %v445, 127
      %v837 = vpop.permute.xlu0 %836
      %838 = vrot.lane.b32.xlu0 %v446, 127
      %v839 = vpop.permute.xlu0 %838
      %840 = vrot.lane.b32.xlu0 %v447, 127
      %v841 = vpop.permute.xlu0 %840
      %842 = vrot.lane.b32.xlu0 %v448, 127
      %v843 = vpop.permute.xlu0 %842
      %844 = vrot.lane.b32.xlu0 %v449, 127
      %v845 = vpop.permute.xlu0 %844
      %846 = vrot.lane.b32.xlu0 %v450, 127
      %v847 = vpop.permute.xlu0 %846
      %848 = vrot.lane.b32.xlu0 %v451, 127
      %v849 = vpop.permute.xlu0 %848
      %850 = vrot.lane.b32.xlu0 %v452, 127
      %v851 = vpop.permute.xlu0 %850
      %852 = vrot.lane.b32.xlu0 %v453, 127
      %v853 = vpop.permute.xlu0 %852
      %854 = vrot.lane.b32.xlu0 %v454, 127
      %v855 = vpop.permute.xlu0 %854
      %856 = vrot.lane.b32.xlu0 %v455, 127
      %v857 = vpop.permute.xlu0 %856
      %858 = vrot.lane.b32.xlu0 %v456, 127
      %v859 = vpop.permute.xlu0 %858
      %860 = vrot.lane.b32.xlu0 %v457, 127
      %v861 = vpop.permute.xlu0 %860
      %862 = vrot.lane.b32.xlu0 %v458, 127
      %v863 = vpop.permute.xlu0 %862
      %864 = vrot.lane.b32.xlu0 %v459, 127
      %v865 = vpop.permute.xlu0 %864
      %866 = vrot.lane.b32.xlu0 %v460, 127
      %v867 = vpop.permute.xlu0 %866
      %868 = vrot.lane.b32.xlu0 %v461, 127
      %v869 = vpop.permute.xlu0 %868
      %v870 = vsub.f32 %v775, %v823
      %v871 = vsub.f32 %v777, %v825
      %v872 = vsub.f32 %v779, %v827
      %v873 = vsub.f32 %v781, %v829
      %v874 = vsub.f32 %v783, %v831
      %v875 = vsub.f32 %v785, %v833
      %v876 = vsub.f32 %v787, %v835
      %v877 = vsub.f32 %v789, %v837
      %v878 = vsub.f32 %v791, %v839
      %v879 = vsub.f32 %v793, %v841
      %v880 = vsub.f32 %v795, %v843
      %v881 = vsub.f32 %v797, %v845
      %v882 = vsub.f32 %v799, %v847
      %v883 = vsub.f32 %v801, %v849
      %v884 = vsub.f32 %v803, %v851
      %v885 = vsub.f32 %v805, %v853
      %v886 = vsub.f32 %v807, %v855
      %v887 = vsub.f32 %v809, %v857
      %v888 = vsub.f32 %v811, %v859
      %v889 = vsub.f32 %v813, %v861
      %v890 = vsub.f32 %v815, %v863
      %v891 = vsub.f32 %v817, %v865
      %v892 = vsub.f32 %v819, %v867
      %v893 = vsub.f32 %v821, %v869
      %v894 = vmul.f32 %v870, 0.5
      %v895 = vmul.f32 %v871, 0.5
      %v896 = vmul.f32 %v872, 0.5
      %v897 = vmul.f32 %v873, 0.5
      %v898 = vmul.f32 %v874, 0.5
      %v899 = vmul.f32 %v875, 0.5
      %v900 = vmul.f32 %v876, 0.5
      %v901 = vmul.f32 %v877, 0.5
      %v902 = vmul.f32 %v878, 0.5
      %v903 = vmul.f32 %v879, 0.5
      %v904 = vmul.f32 %v880, 0.5
      %v905 = vmul.f32 %v881, 0.5
      %v906 = vmul.f32 %v882, 0.5
      %v907 = vmul.f32 %v883, 0.5
      %v908 = vmul.f32 %v884, 0.5
      %v909 = vmul.f32 %v885, 0.5
      %v910 = vmul.f32 %v886, 0.5
      %v911 = vmul.f32 %v887, 0.5
      %v912 = vmul.f32 %v888, 0.5
      %v913 = vmul.f32 %v889, 0.5
      %v914 = vmul.f32 %v890, 0.5
      %v915 = vmul.f32 %v891, 0.5
      %v916 = vmul.f32 %v892, 0.5
      %v917 = vmul.f32 %v893, 0.5
      %v918 = vmul.f32 %v894, %v894
      %v919 = vmul.f32 %v895, %v895
      %v920 = vmul.f32 %v896, %v896
      %v921 = vmul.f32 %v897, %v897
      %v922 = vmul.f32 %v898, %v898
      %v923 = vmul.f32 %v899, %v899
      %v924 = vmul.f32 %v900, %v900
      %v925 = vmul.f32 %v901, %v901
      %v926 = vmul.f32 %v902, %v902
      %v927 = vmul.f32 %v903, %v903
      %v928 = vmul.f32 %v904, %v904
      %v929 = vmul.f32 %v905, %v905
      %v930 = vmul.f32 %v906, %v906
      %v931 = vmul.f32 %v907, %v907
      %v932 = vmul.f32 %v908, %v908
      %v933 = vmul.f32 %v909, %v909
      %v934 = vmul.f32 %v910, %v910
      %v935 = vmul.f32 %v911, %v911
      %v936 = vmul.f32 %v912, %v912
      %v937 = vmul.f32 %v913, %v913
      %v938 = vmul.f32 %v914, %v914
      %v939 = vmul.f32 %v915, %v915
      %v940 = vmul.f32 %v916, %v916
      %v941 = vmul.f32 %v917, %v917
      %v942 = vsel %vm114, %v918, 0.0
      %v943 = vsel %vm115, %v919, 0.0
      %v944 = vsel %vm114, %v920, 0.0
      %v945 = vsel %vm115, %v921, 0.0
      %v946 = vsel %vm114, %v922, 0.0
      %v947 = vsel %vm115, %v923, 0.0
      %v948 = vsel %vm114, %v924, 0.0
      %v949 = vsel %vm115, %v925, 0.0
      %v950 = vsel %vm114, %v926, 0.0
      %v951 = vsel %vm115, %v927, 0.0
      %v952 = vsel %vm114, %v928, 0.0
      %v953 = vsel %vm115, %v929, 0.0
      %v954 = vsel %vm114, %v930, 0.0
      %v955 = vsel %vm115, %v931, 0.0
      %v956 = vsel %vm114, %v932, 0.0
      %v957 = vsel %vm115, %v933, 0.0
      %v958 = vsel %vm114, %v934, 0.0
      %v959 = vsel %vm115, %v935, 0.0
      %v960 = vsel %vm114, %v936, 0.0
      %v961 = vsel %vm115, %v937, 0.0
      %v962 = vsel %vm114, %v938, 0.0
      %v963 = vsel %vm115, %v939, 0.0
      %v964 = vsel %vm114, %v940, 0.0
      %v965 = vsel %vm115, %v941, 0.0
      %v966 = vadd.f32 %v750, %v942
      %v967 = vadd.f32 %v751, %v943
      %v968 = vadd.f32 %v752, %v944
      %v969 = vadd.f32 %v753, %v945
      %v970 = vadd.f32 %v754, %v946
      %v971 = vadd.f32 %v755, %v947
      %v972 = vadd.f32 %v756, %v948
      %v973 = vadd.f32 %v757, %v949
      %v974 = vadd.f32 %v758, %v950
      %v975 = vadd.f32 %v759, %v951
      %v976 = vadd.f32 %v760, %v952
      %v977 = vadd.f32 %v761, %v953
      %v978 = vadd.f32 %v762, %v954
      %v979 = vadd.f32 %v763, %v955
      %v980 = vadd.f32 %v764, %v956
      %v981 = vadd.f32 %v765, %v957
      %v982 = vadd.f32 %v766, %v958
      %v983 = vadd.f32 %v767, %v959
      %v984 = vadd.f32 %v768, %v960
      %v985 = vadd.f32 %v769, %v961
      %v986 = vadd.f32 %v770, %v962
      %v987 = vadd.f32 %v771, %v963
      %v988 = vadd.f32 %v772, %v964
      %v989 = vadd.f32 %v773, %v965
      %v990 = vrot.slane %v146, 7
      %v991 = vrot.slane %v148, 7
      %v992 = vrot.slane %v150, 7
      %v993 = vrot.slane %v152, 7
      %v994 = vrot.slane %v154, 7
      %v995 = vrot.slane %v156, 7
      %v996 = vrot.slane %v158, 7
      %v997 = vrot.slane %v160, 7
      %v998 = vrot.slane %v162, 7
      %v999 = vrot.slane %v164, 7
      %v1000 = vrot.slane %v166, 7
      %v1001 = vrot.slane %v168, 7
      %v1002 = vrot.slane %v147, 7
      %v1003 = vrot.slane %v149, 7
      %v1004 = vrot.slane %v151, 7
      %v1005 = vrot.slane %v153, 7
      %v1006 = vrot.slane %v155, 7
      %v1007 = vrot.slane %v157, 7
      %v1008 = vrot.slane %v159, 7
      %v1009 = vrot.slane %v161, 7
      %v1010 = vrot.slane %v163, 7
      %v1011 = vrot.slane %v165, 7
      %v1012 = vrot.slane %v167, 7
      %v1013 = vrot.slane %v169, 7
      %v1014 = vsel %vm196, %v990, %v1002
      %v1015 = vsel %vm196, %v991, %v1003
      %v1016 = vsel %vm196, %v992, %v1004
      %v1017 = vsel %vm196, %v993, %v1005
      %v1018 = vsel %vm196, %v994, %v1006
      %v1019 = vsel %vm196, %v995, %v1007
      %v1020 = vsel %vm196, %v996, %v1008
      %v1021 = vsel %vm196, %v997, %v1009
      %v1022 = vsel %vm196, %v998, %v1010
      %v1023 = vsel %vm196, %v999, %v1011
      %v1024 = vsel %vm196, %v1000, %v1012
      %v1025 = vsel %vm196, %v1001, %v1013
      %v1026 = vsel %vm196, %v1002, %v990
      %v1027 = vsel %vm196, %v1003, %v991
      %v1028 = vsel %vm196, %v1004, %v992
      %v1029 = vsel %vm196, %v1005, %v993
      %v1030 = vsel %vm196, %v1006, %v994
      %v1031 = vsel %vm196, %v1007, %v995
      %v1032 = vsel %vm196, %v1008, %v996
      %v1033 = vsel %vm196, %v1009, %v997
      %v1034 = vsel %vm196, %v1010, %v998
      %v1035 = vsel %vm196, %v1011, %v999
      %v1036 = vsel %vm196, %v1012, %v1000
      %v1037 = vsel %vm196, %v1013, %v1001
      %v1038 = vrot.slane %v146, 1
      %v1039 = vrot.slane %v148, 1
      %v1040 = vrot.slane %v150, 1
      %v1041 = vrot.slane %v152, 1
      %v1042 = vrot.slane %v154, 1
      %v1043 = vrot.slane %v156, 1
      %v1044 = vrot.slane %v158, 1
      %v1045 = vrot.slane %v160, 1
      %v1046 = vrot.slane %v162, 1
      %v1047 = vrot.slane %v164, 1
      %v1048 = vrot.slane %v166, 1
      %v1049 = vrot.slane %v168, 1
      %v1050 = vrot.slane %v147, 1
      %v1051 = vrot.slane %v149, 1
      %v1052 = vrot.slane %v151, 1
      %v1053 = vrot.slane %v153, 1
      %v1054 = vrot.slane %v155, 1
      %v1055 = vrot.slane %v157, 1
      %v1056 = vrot.slane %v159, 1
      %v1057 = vrot.slane %v161, 1
      %v1058 = vrot.slane %v163, 1
      %v1059 = vrot.slane %v165, 1
      %v1060 = vrot.slane %v167, 1
      %v1061 = vrot.slane %v169, 1
      %v1062 = vsel %vm245, %v1038, %v1050
      %v1063 = vsel %vm245, %v1039, %v1051
      %v1064 = vsel %vm245, %v1040, %v1052
      %v1065 = vsel %vm245, %v1041, %v1053
      %v1066 = vsel %vm245, %v1042, %v1054
      %v1067 = vsel %vm245, %v1043, %v1055
      %v1068 = vsel %vm245, %v1044, %v1056
      %v1069 = vsel %vm245, %v1045, %v1057
      %v1070 = vsel %vm245, %v1046, %v1058
      %v1071 = vsel %vm245, %v1047, %v1059
      %v1072 = vsel %vm245, %v1048, %v1060
      %v1073 = vsel %vm245, %v1049, %v1061
      %v1074 = vsel %vm245, %v1050, %v1038
      %v1075 = vsel %vm245, %v1051, %v1039
      %v1076 = vsel %vm245, %v1052, %v1040
      %v1077 = vsel %vm245, %v1053, %v1041
      %v1078 = vsel %vm245, %v1054, %v1042
      %v1079 = vsel %vm245, %v1055, %v1043
      %v1080 = vsel %vm245, %v1056, %v1044
      %v1081 = vsel %vm245, %v1057, %v1045
      %v1082 = vsel %vm245, %v1058, %v1046
      %v1083 = vsel %vm245, %v1059, %v1047
      %v1084 = vsel %vm245, %v1060, %v1048
      %v1085 = vsel %vm245, %v1061, %v1049
      %v1086 = vsub.f32 %v1026, %v1062
      %v1087 = vsub.f32 %v1014, %v1074
      %v1088 = vsub.f32 %v1027, %v1063
      %v1089 = vsub.f32 %v1015, %v1075
      %v1090 = vsub.f32 %v1028, %v1064
      %v1091 = vsub.f32 %v1016, %v1076
      %v1092 = vsub.f32 %v1029, %v1065
      %v1093 = vsub.f32 %v1017, %v1077
      %v1094 = vsub.f32 %v1030, %v1066
      %v1095 = vsub.f32 %v1018, %v1078
      %v1096 = vsub.f32 %v1031, %v1067
      %v1097 = vsub.f32 %v1019, %v1079
      %v1098 = vsub.f32 %v1032, %v1068
      %v1099 = vsub.f32 %v1020, %v1080
      %v1100 = vsub.f32 %v1033, %v1069
      %v1101 = vsub.f32 %v1021, %v1081
      %v1102 = vsub.f32 %v1034, %v1070
      %v1103 = vsub.f32 %v1022, %v1082
      %v1104 = vsub.f32 %v1035, %v1071
      %v1105 = vsub.f32 %v1023, %v1083
      %v1106 = vsub.f32 %v1036, %v1072
      %v1107 = vsub.f32 %v1024, %v1084
      %v1108 = vsub.f32 %v1037, %v1073
      %v1109 = vsub.f32 %v1025, %v1085
      %v1110 = vmul.f32 %v1086, 0.5
      %v1111 = vmul.f32 %v1087, 0.5
      %v1112 = vmul.f32 %v1088, 0.5
      %v1113 = vmul.f32 %v1089, 0.5
      %v1114 = vmul.f32 %v1090, 0.5
      %v1115 = vmul.f32 %v1091, 0.5
      %v1116 = vmul.f32 %v1092, 0.5
      %v1117 = vmul.f32 %v1093, 0.5
      %v1118 = vmul.f32 %v1094, 0.5
      %v1119 = vmul.f32 %v1095, 0.5
      %v1120 = vmul.f32 %v1096, 0.5
      %v1121 = vmul.f32 %v1097, 0.5
      %v1122 = vmul.f32 %v1098, 0.5
      %v1123 = vmul.f32 %v1099, 0.5
      %v1124 = vmul.f32 %v1100, 0.5
      %v1125 = vmul.f32 %v1101, 0.5
      %v1126 = vmul.f32 %v1102, 0.5
      %v1127 = vmul.f32 %v1103, 0.5
      %v1128 = vmul.f32 %v1104, 0.5
      %v1129 = vmul.f32 %v1105, 0.5
      %v1130 = vmul.f32 %v1106, 0.5
      %v1131 = vmul.f32 %v1107, 0.5
      %v1132 = vmul.f32 %v1108, 0.5
      %v1133 = vmul.f32 %v1109, 0.5
      %v1134 = vmul.f32 %v1110, %v1110
      %v1135 = vmul.f32 %v1111, %v1111
      %v1136 = vmul.f32 %v1112, %v1112
      %v1137 = vmul.f32 %v1113, %v1113
      %v1138 = vmul.f32 %v1114, %v1114
      %v1139 = vmul.f32 %v1115, %v1115
      %v1140 = vmul.f32 %v1116, %v1116
      %v1141 = vmul.f32 %v1117, %v1117
      %v1142 = vmul.f32 %v1118, %v1118
      %v1143 = vmul.f32 %v1119, %v1119
      %v1144 = vmul.f32 %v1120, %v1120
      %v1145 = vmul.f32 %v1121, %v1121
      %v1146 = vmul.f32 %v1122, %v1122
      %v1147 = vmul.f32 %v1123, %v1123
      %v1148 = vmul.f32 %v1124, %v1124
      %v1149 = vmul.f32 %v1125, %v1125
      %v1150 = vmul.f32 %v1126, %v1126
      %v1151 = vmul.f32 %v1127, %v1127
      %v1152 = vmul.f32 %v1128, %v1128
      %v1153 = vmul.f32 %v1129, %v1129
      %v1154 = vmul.f32 %v1130, %v1130
      %v1155 = vmul.f32 %v1131, %v1131
      %v1156 = vmul.f32 %v1132, %v1132
      %v1157 = vmul.f32 %v1133, %v1133
      %v1158 = vsel %vm114, %v1134, 0.0
      %v1159 = vsel %vm115, %v1135, 0.0
      %v1160 = vsel %vm114, %v1136, 0.0
      %v1161 = vsel %vm115, %v1137, 0.0
      %v1162 = vsel %vm114, %v1138, 0.0
      %v1163 = vsel %vm115, %v1139, 0.0
      %v1164 = vsel %vm114, %v1140, 0.0
      %v1165 = vsel %vm115, %v1141, 0.0
      %v1166 = vsel %vm114, %v1142, 0.0
      %v1167 = vsel %vm115, %v1143, 0.0
      %v1168 = vsel %vm114, %v1144, 0.0
      %v1169 = vsel %vm115, %v1145, 0.0
      %v1170 = vsel %vm114, %v1146, 0.0
      %v1171 = vsel %vm115, %v1147, 0.0
      %v1172 = vsel %vm114, %v1148, 0.0
      %v1173 = vsel %vm115, %v1149, 0.0
      %v1174 = vsel %vm114, %v1150, 0.0
      %v1175 = vsel %vm115, %v1151, 0.0
      %v1176 = vsel %vm114, %v1152, 0.0
      %v1177 = vsel %vm115, %v1153, 0.0
      %v1178 = vsel %vm114, %v1154, 0.0
      %v1179 = vsel %vm115, %v1155, 0.0
      %v1180 = vsel %vm114, %v1156, 0.0
      %v1181 = vsel %vm115, %v1157, 0.0
      %v1182 = vmul.f32 %v1158, 2.0
      %v1183 = vmul.f32 %v1159, 2.0
      %v1184 = vmul.f32 %v1160, 2.0
      %v1185 = vmul.f32 %v1161, 2.0
      %v1186 = vmul.f32 %v1162, 2.0
      %v1187 = vmul.f32 %v1163, 2.0
      %v1188 = vmul.f32 %v1164, 2.0
      %v1189 = vmul.f32 %v1165, 2.0
      %v1190 = vmul.f32 %v1166, 2.0
      %v1191 = vmul.f32 %v1167, 2.0
      %v1192 = vmul.f32 %v1168, 2.0
      %v1193 = vmul.f32 %v1169, 2.0
      %v1194 = vmul.f32 %v1170, 2.0
      %v1195 = vmul.f32 %v1171, 2.0
      %v1196 = vmul.f32 %v1172, 2.0
      %v1197 = vmul.f32 %v1173, 2.0
      %v1198 = vmul.f32 %v1174, 2.0
      %v1199 = vmul.f32 %v1175, 2.0
      %v1200 = vmul.f32 %v1176, 2.0
      %v1201 = vmul.f32 %v1177, 2.0
      %v1202 = vmul.f32 %v1178, 2.0
      %v1203 = vmul.f32 %v1179, 2.0
      %v1204 = vmul.f32 %v1180, 2.0
      %v1205 = vmul.f32 %v1181, 2.0
      %v1206 = vadd.f32 %v966, %v1182
      %v1207 = vadd.f32 %v967, %v1183
      %v1208 = vadd.f32 %v968, %v1184
      %v1209 = vadd.f32 %v969, %v1185
      %v1210 = vadd.f32 %v970, %v1186
      %v1211 = vadd.f32 %v971, %v1187
      %v1212 = vadd.f32 %v972, %v1188
      %v1213 = vadd.f32 %v973, %v1189
      %v1214 = vadd.f32 %v974, %v1190
      %v1215 = vadd.f32 %v975, %v1191
      %v1216 = vadd.f32 %v976, %v1192
      %v1217 = vadd.f32 %v977, %v1193
      %v1218 = vadd.f32 %v978, %v1194
      %v1219 = vadd.f32 %v979, %v1195
      %v1220 = vadd.f32 %v980, %v1196
      %v1221 = vadd.f32 %v981, %v1197
      %v1222 = vadd.f32 %v982, %v1198
      %v1223 = vadd.f32 %v983, %v1199
      %v1224 = vadd.f32 %v984, %v1200
      %v1225 = vadd.f32 %v985, %v1201
      %v1226 = vadd.f32 %v986, %v1202
      %v1227 = vadd.f32 %v987, %v1203
      %v1228 = vadd.f32 %v988, %v1204
      %v1229 = vadd.f32 %v989, %v1205
      %1230 = vrot.lane.b32.xlu0 %v146, 1
      %v1231 = vpop.permute.xlu0 %1230
      %1232 = vrot.lane.b32.xlu0 %v147, 1
      %v1233 = vpop.permute.xlu0 %1232
      %1234 = vrot.lane.b32.xlu0 %v148, 1
      %v1235 = vpop.permute.xlu0 %1234
      %1236 = vrot.lane.b32.xlu0 %v149, 1
      %v1237 = vpop.permute.xlu0 %1236
      %1238 = vrot.lane.b32.xlu0 %v150, 1
      %v1239 = vpop.permute.xlu0 %1238
      %1240 = vrot.lane.b32.xlu0 %v151, 1
      %v1241 = vpop.permute.xlu0 %1240
      %1242 = vrot.lane.b32.xlu0 %v152, 1
      %v1243 = vpop.permute.xlu0 %1242
      %1244 = vrot.lane.b32.xlu0 %v153, 1
      %v1245 = vpop.permute.xlu0 %1244
      %1246 = vrot.lane.b32.xlu0 %v154, 1
      %v1247 = vpop.permute.xlu0 %1246
      %1248 = vrot.lane.b32.xlu0 %v155, 1
      %v1249 = vpop.permute.xlu0 %1248
      %1250 = vrot.lane.b32.xlu0 %v156, 1
      %v1251 = vpop.permute.xlu0 %1250
      %1252 = vrot.lane.b32.xlu0 %v157, 1
      %v1253 = vpop.permute.xlu0 %1252
      %1254 = vrot.lane.b32.xlu0 %v158, 1
      %v1255 = vpop.permute.xlu0 %1254
      %1256 = vrot.lane.b32.xlu0 %v159, 1
      %v1257 = vpop.permute.xlu0 %1256
      %1258 = vrot.lane.b32.xlu0 %v160, 1
      %v1259 = vpop.permute.xlu0 %1258
      %1260 = vrot.lane.b32.xlu0 %v161, 1
      %v1261 = vpop.permute.xlu0 %1260
      %1262 = vrot.lane.b32.xlu0 %v162, 1
      %v1263 = vpop.permute.xlu0 %1262
      %1264 = vrot.lane.b32.xlu0 %v163, 1
      %v1265 = vpop.permute.xlu0 %1264
      %1266 = vrot.lane.b32.xlu0 %v164, 1
      %v1267 = vpop.permute.xlu0 %1266
      %1268 = vrot.lane.b32.xlu0 %v165, 1
      %v1269 = vpop.permute.xlu0 %1268
      %1270 = vrot.lane.b32.xlu0 %v166, 1
      %v1271 = vpop.permute.xlu0 %1270
      %1272 = vrot.lane.b32.xlu0 %v167, 1
      %v1273 = vpop.permute.xlu0 %1272
      %1274 = vrot.lane.b32.xlu0 %v168, 1
      %v1275 = vpop.permute.xlu0 %1274
      %1276 = vrot.lane.b32.xlu0 %v169, 1
      %v1277 = vpop.permute.xlu0 %1276
      %1278 = vrot.lane.b32.xlu0 %v146, 127
      %v1279 = vpop.permute.xlu0 %1278
      %1280 = vrot.lane.b32.xlu0 %v147, 127
      %v1281 = vpop.permute.xlu0 %1280
      %1282 = vrot.lane.b32.xlu0 %v148, 127
      %v1283 = vpop.permute.xlu0 %1282
      %1284 = vrot.lane.b32.xlu0 %v149, 127
      %v1285 = vpop.permute.xlu0 %1284
      %1286 = vrot.lane.b32.xlu0 %v150, 127
      %v1287 = vpop.permute.xlu0 %1286
      %1288 = vrot.lane.b32.xlu0 %v151, 127
      %v1289 = vpop.permute.xlu0 %1288
      %1290 = vrot.lane.b32.xlu0 %v152, 127
      %v1291 = vpop.permute.xlu0 %1290
      %1292 = vrot.lane.b32.xlu0 %v153, 127
      %v1293 = vpop.permute.xlu0 %1292
      %1294 = vrot.lane.b32.xlu0 %v154, 127
      %v1295 = vpop.permute.xlu0 %1294
      %1296 = vrot.lane.b32.xlu0 %v155, 127
      %v1297 = vpop.permute.xlu0 %1296
      %1298 = vrot.lane.b32.xlu0 %v156, 127
      %v1299 = vpop.permute.xlu0 %1298
      %1300 = vrot.lane.b32.xlu0 %v157, 127
      %v1301 = vpop.permute.xlu0 %1300
      %1302 = vrot.lane.b32.xlu0 %v158, 127
      %v1303 = vpop.permute.xlu0 %1302
      %1304 = vrot.lane.b32.xlu0 %v159, 127
      %v1305 = vpop.permute.xlu0 %1304
      %1306 = vrot.lane.b32.xlu0 %v160, 127
      %v1307 = vpop.permute.xlu0 %1306
      %1308 = vrot.lane.b32.xlu0 %v161, 127
      %v1309 = vpop.permute.xlu0 %1308
      %1310 = vrot.lane.b32.xlu0 %v162, 127
      %v1311 = vpop.permute.xlu0 %1310
      %1312 = vrot.lane.b32.xlu0 %v163, 127
      %v1313 = vpop.permute.xlu0 %1312
      %1314 = vrot.lane.b32.xlu0 %v164, 127
      %v1315 = vpop.permute.xlu0 %1314
      %1316 = vrot.lane.b32.xlu0 %v165, 127
      %v1317 = vpop.permute.xlu0 %1316
      %1318 = vrot.lane.b32.xlu0 %v166, 127
      %v1319 = vpop.permute.xlu0 %1318
      %1320 = vrot.lane.b32.xlu0 %v167, 127
      %v1321 = vpop.permute.xlu0 %1320
      %1322 = vrot.lane.b32.xlu0 %v168, 127
      %v1323 = vpop.permute.xlu0 %1322
      %1324 = vrot.lane.b32.xlu0 %v169, 127
      %v1325 = vpop.permute.xlu0 %1324
      %v1326 = vsub.f32 %v1231, %v1279
      %v1327 = vsub.f32 %v1233, %v1281
      %v1328 = vsub.f32 %v1235, %v1283
      %v1329 = vsub.f32 %v1237, %v1285
      %v1330 = vsub.f32 %v1239, %v1287
      %v1331 = vsub.f32 %v1241, %v1289
      %v1332 = vsub.f32 %v1243, %v1291
      %v1333 = vsub.f32 %v1245, %v1293
      %v1334 = vsub.f32 %v1247, %v1295
      %v1335 = vsub.f32 %v1249, %v1297
      %v1336 = vsub.f32 %v1251, %v1299
      %v1337 = vsub.f32 %v1253, %v1301
      %v1338 = vsub.f32 %v1255, %v1303
      %v1339 = vsub.f32 %v1257, %v1305
      %v1340 = vsub.f32 %v1259, %v1307
      %v1341 = vsub.f32 %v1261, %v1309
      %v1342 = vsub.f32 %v1263, %v1311
      %v1343 = vsub.f32 %v1265, %v1313
      %v1344 = vsub.f32 %v1267, %v1315
      %v1345 = vsub.f32 %v1269, %v1317
      %v1346 = vsub.f32 %v1271, %v1319
      %v1347 = vsub.f32 %v1273, %v1321
      %v1348 = vsub.f32 %v1275, %v1323
      %v1349 = vsub.f32 %v1277, %v1325
      %v1350 = vmul.f32 %v1326, 0.5
      %v1351 = vmul.f32 %v1327, 0.5
      %v1352 = vmul.f32 %v1328, 0.5
      %v1353 = vmul.f32 %v1329, 0.5
      %v1354 = vmul.f32 %v1330, 0.5
      %v1355 = vmul.f32 %v1331, 0.5
      %v1356 = vmul.f32 %v1332, 0.5
      %v1357 = vmul.f32 %v1333, 0.5
      %v1358 = vmul.f32 %v1334, 0.5
      %v1359 = vmul.f32 %v1335, 0.5
      %v1360 = vmul.f32 %v1336, 0.5
      %v1361 = vmul.f32 %v1337, 0.5
      %v1362 = vmul.f32 %v1338, 0.5
      %v1363 = vmul.f32 %v1339, 0.5
      %v1364 = vmul.f32 %v1340, 0.5
      %v1365 = vmul.f32 %v1341, 0.5
      %v1366 = vmul.f32 %v1342, 0.5
      %v1367 = vmul.f32 %v1343, 0.5
      %v1368 = vmul.f32 %v1344, 0.5
      %v1369 = vmul.f32 %v1345, 0.5
      %v1370 = vmul.f32 %v1346, 0.5
      %v1371 = vmul.f32 %v1347, 0.5
      %v1372 = vmul.f32 %v1348, 0.5
      %v1373 = vmul.f32 %v1349, 0.5
      %v1374 = vmul.f32 %v1350, %v1350
      %v1375 = vmul.f32 %v1351, %v1351
      %v1376 = vmul.f32 %v1352, %v1352
      %v1377 = vmul.f32 %v1353, %v1353
      %v1378 = vmul.f32 %v1354, %v1354
      %v1379 = vmul.f32 %v1355, %v1355
      %v1380 = vmul.f32 %v1356, %v1356
      %v1381 = vmul.f32 %v1357, %v1357
      %v1382 = vmul.f32 %v1358, %v1358
      %v1383 = vmul.f32 %v1359, %v1359
      %v1384 = vmul.f32 %v1360, %v1360
      %v1385 = vmul.f32 %v1361, %v1361
      %v1386 = vmul.f32 %v1362, %v1362
      %v1387 = vmul.f32 %v1363, %v1363
      %v1388 = vmul.f32 %v1364, %v1364
      %v1389 = vmul.f32 %v1365, %v1365
      %v1390 = vmul.f32 %v1366, %v1366
      %v1391 = vmul.f32 %v1367, %v1367
      %v1392 = vmul.f32 %v1368, %v1368
      %v1393 = vmul.f32 %v1369, %v1369
      %v1394 = vmul.f32 %v1370, %v1370
      %v1395 = vmul.f32 %v1371, %v1371
      %v1396 = vmul.f32 %v1372, %v1372
      %v1397 = vmul.f32 %v1373, %v1373
      %v1398 = vsel %vm114, %v1374, 0.0
      %v1399 = vsel %vm115, %v1375, 0.0
      %v1400 = vsel %vm114, %v1376, 0.0
      %v1401 = vsel %vm115, %v1377, 0.0
      %v1402 = vsel %vm114, %v1378, 0.0
      %v1403 = vsel %vm115, %v1379, 0.0
      %v1404 = vsel %vm114, %v1380, 0.0
      %v1405 = vsel %vm115, %v1381, 0.0
      %v1406 = vsel %vm114, %v1382, 0.0
      %v1407 = vsel %vm115, %v1383, 0.0
      %v1408 = vsel %vm114, %v1384, 0.0
      %v1409 = vsel %vm115, %v1385, 0.0
      %v1410 = vsel %vm114, %v1386, 0.0
      %v1411 = vsel %vm115, %v1387, 0.0
      %v1412 = vsel %vm114, %v1388, 0.0
      %v1413 = vsel %vm115, %v1389, 0.0
      %v1414 = vsel %vm114, %v1390, 0.0
      %v1415 = vsel %vm115, %v1391, 0.0
      %v1416 = vsel %vm114, %v1392, 0.0
      %v1417 = vsel %vm115, %v1393, 0.0
      %v1418 = vsel %vm114, %v1394, 0.0
      %v1419 = vsel %vm115, %v1395, 0.0
      %v1420 = vsel %vm114, %v1396, 0.0
      %v1421 = vsel %vm115, %v1397, 0.0
      %v1422 = vmul.f32 %v1398, 2.0
      %v1423 = vmul.f32 %v1399, 2.0
      %v1424 = vmul.f32 %v1400, 2.0
      %v1425 = vmul.f32 %v1401, 2.0
      %v1426 = vmul.f32 %v1402, 2.0
      %v1427 = vmul.f32 %v1403, 2.0
      %v1428 = vmul.f32 %v1404, 2.0
      %v1429 = vmul.f32 %v1405, 2.0
      %v1430 = vmul.f32 %v1406, 2.0
      %v1431 = vmul.f32 %v1407, 2.0
      %v1432 = vmul.f32 %v1408, 2.0
      %v1433 = vmul.f32 %v1409, 2.0
      %v1434 = vmul.f32 %v1410, 2.0
      %v1435 = vmul.f32 %v1411, 2.0
      %v1436 = vmul.f32 %v1412, 2.0
      %v1437 = vmul.f32 %v1413, 2.0
      %v1438 = vmul.f32 %v1414, 2.0
      %v1439 = vmul.f32 %v1415, 2.0
      %v1440 = vmul.f32 %v1416, 2.0
      %v1441 = vmul.f32 %v1417, 2.0
      %v1442 = vmul.f32 %v1418, 2.0
      %v1443 = vmul.f32 %v1419, 2.0
      %v1444 = vmul.f32 %v1420, 2.0
      %v1445 = vmul.f32 %v1421, 2.0
      %v1446 = vadd.f32 %v1206, %v1422
      %v1447 = vadd.f32 %v1207, %v1423
      %v1448 = vadd.f32 %v1208, %v1424
      %v1449 = vadd.f32 %v1209, %v1425
      %v1450 = vadd.f32 %v1210, %v1426
      %v1451 = vadd.f32 %v1211, %v1427
      %v1452 = vadd.f32 %v1212, %v1428
      %v1453 = vadd.f32 %v1213, %v1429
      %v1454 = vadd.f32 %v1214, %v1430
      %v1455 = vadd.f32 %v1215, %v1431
      %v1456 = vadd.f32 %v1216, %v1432
      %v1457 = vadd.f32 %v1217, %v1433
      %v1458 = vadd.f32 %v1218, %v1434
      %v1459 = vadd.f32 %v1219, %v1435
      %v1460 = vadd.f32 %v1220, %v1436
      %v1461 = vadd.f32 %v1221, %v1437
      %v1462 = vadd.f32 %v1222, %v1438
      %v1463 = vadd.f32 %v1223, %v1439
      %v1464 = vadd.f32 %v1224, %v1440
      %v1465 = vadd.f32 %v1225, %v1441
      %v1466 = vadd.f32 %v1226, %v1442
      %v1467 = vadd.f32 %v1227, %v1443
      %v1468 = vadd.f32 %v1228, %v1444
      %v1469 = vadd.f32 %v1229, %v1445
      %1470 = vrot.lane.b32.xlu0 %v294, 1
      %v1471 = vpop.permute.xlu0 %1470
      %1472 = vrot.lane.b32.xlu0 %v295, 1
      %v1473 = vpop.permute.xlu0 %1472
      %1474 = vrot.lane.b32.xlu0 %v296, 1
      %v1475 = vpop.permute.xlu0 %1474
      %1476 = vrot.lane.b32.xlu0 %v297, 1
      %v1477 = vpop.permute.xlu0 %1476
      %1478 = vrot.lane.b32.xlu0 %v298, 1
      %v1479 = vpop.permute.xlu0 %1478
      %1480 = vrot.lane.b32.xlu0 %v299, 1
      %v1481 = vpop.permute.xlu0 %1480
      %1482 = vrot.lane.b32.xlu0 %v300, 1
      %v1483 = vpop.permute.xlu0 %1482
      %1484 = vrot.lane.b32.xlu0 %v301, 1
      %v1485 = vpop.permute.xlu0 %1484
      %1486 = vrot.lane.b32.xlu0 %v302, 1
      %v1487 = vpop.permute.xlu0 %1486
      %1488 = vrot.lane.b32.xlu0 %v303, 1
      %v1489 = vpop.permute.xlu0 %1488
      %1490 = vrot.lane.b32.xlu0 %v304, 1
      %v1491 = vpop.permute.xlu0 %1490
      %1492 = vrot.lane.b32.xlu0 %v305, 1
      %v1493 = vpop.permute.xlu0 %1492
      %1494 = vrot.lane.b32.xlu0 %v306, 1
      %v1495 = vpop.permute.xlu0 %1494
      %1496 = vrot.lane.b32.xlu0 %v307, 1
      %v1497 = vpop.permute.xlu0 %1496
      %1498 = vrot.lane.b32.xlu0 %v308, 1
      %v1499 = vpop.permute.xlu0 %1498
      %1500 = vrot.lane.b32.xlu0 %v309, 1
      %v1501 = vpop.permute.xlu0 %1500
      %1502 = vrot.lane.b32.xlu0 %v310, 1
      %v1503 = vpop.permute.xlu0 %1502
      %1504 = vrot.lane.b32.xlu0 %v311, 1
      %v1505 = vpop.permute.xlu0 %1504
      %1506 = vrot.lane.b32.xlu0 %v312, 1
      %v1507 = vpop.permute.xlu0 %1506
      %1508 = vrot.lane.b32.xlu0 %v313, 1
      %v1509 = vpop.permute.xlu0 %1508
      %1510 = vrot.lane.b32.xlu0 %v314, 1
      %v1511 = vpop.permute.xlu0 %1510
      %1512 = vrot.lane.b32.xlu0 %v315, 1
      %v1513 = vpop.permute.xlu0 %1512
      %1514 = vrot.lane.b32.xlu0 %v316, 1
      %v1515 = vpop.permute.xlu0 %1514
      %1516 = vrot.lane.b32.xlu0 %v317, 1
      %v1517 = vpop.permute.xlu0 %1516
      %1518 = vrot.lane.b32.xlu0 %v294, 127
      %v1519 = vpop.permute.xlu0 %1518
      %1520 = vrot.lane.b32.xlu0 %v295, 127
      %v1521 = vpop.permute.xlu0 %1520
      %1522 = vrot.lane.b32.xlu0 %v296, 127
      %v1523 = vpop.permute.xlu0 %1522
      %1524 = vrot.lane.b32.xlu0 %v297, 127
      %v1525 = vpop.permute.xlu0 %1524
      %1526 = vrot.lane.b32.xlu0 %v298, 127
      %v1527 = vpop.permute.xlu0 %1526
      %1528 = vrot.lane.b32.xlu0 %v299, 127
      %v1529 = vpop.permute.xlu0 %1528
      %1530 = vrot.lane.b32.xlu0 %v300, 127
      %v1531 = vpop.permute.xlu0 %1530
      %1532 = vrot.lane.b32.xlu0 %v301, 127
      %v1533 = vpop.permute.xlu0 %1532
      %1534 = vrot.lane.b32.xlu0 %v302, 127
      %v1535 = vpop.permute.xlu0 %1534
      %1536 = vrot.lane.b32.xlu0 %v303, 127
      %v1537 = vpop.permute.xlu0 %1536
      %1538 = vrot.lane.b32.xlu0 %v304, 127
      %v1539 = vpop.permute.xlu0 %1538
      %1540 = vrot.lane.b32.xlu0 %v305, 127
      %v1541 = vpop.permute.xlu0 %1540
      %1542 = vrot.lane.b32.xlu0 %v306, 127
      %v1543 = vpop.permute.xlu0 %1542
      %1544 = vrot.lane.b32.xlu0 %v307, 127
      %v1545 = vpop.permute.xlu0 %1544
      %1546 = vrot.lane.b32.xlu0 %v308, 127
      %v1547 = vpop.permute.xlu0 %1546
      %1548 = vrot.lane.b32.xlu0 %v309, 127
      %v1549 = vpop.permute.xlu0 %1548
      %1550 = vrot.lane.b32.xlu0 %v310, 127
      %v1551 = vpop.permute.xlu0 %1550
      %1552 = vrot.lane.b32.xlu0 %v311, 127
      %v1553 = vpop.permute.xlu0 %1552
      %1554 = vrot.lane.b32.xlu0 %v312, 127
      %v1555 = vpop.permute.xlu0 %1554
      %1556 = vrot.lane.b32.xlu0 %v313, 127
      %v1557 = vpop.permute.xlu0 %1556
      %1558 = vrot.lane.b32.xlu0 %v314, 127
      %v1559 = vpop.permute.xlu0 %1558
      %1560 = vrot.lane.b32.xlu0 %v315, 127
      %v1561 = vpop.permute.xlu0 %1560
      %1562 = vrot.lane.b32.xlu0 %v316, 127
      %v1563 = vpop.permute.xlu0 %1562
      %1564 = vrot.lane.b32.xlu0 %v317, 127
      %v1565 = vpop.permute.xlu0 %1564
      %v1566 = vsub.f32 %v1471, %v1519
      %v1567 = vsub.f32 %v1473, %v1521
      %v1568 = vsub.f32 %v1475, %v1523
      %v1569 = vsub.f32 %v1477, %v1525
      %v1570 = vsub.f32 %v1479, %v1527
      %v1571 = vsub.f32 %v1481, %v1529
      %v1572 = vsub.f32 %v1483, %v1531
      %v1573 = vsub.f32 %v1485, %v1533
      %v1574 = vsub.f32 %v1487, %v1535
      %v1575 = vsub.f32 %v1489, %v1537
      %v1576 = vsub.f32 %v1491, %v1539
      %v1577 = vsub.f32 %v1493, %v1541
      %v1578 = vsub.f32 %v1495, %v1543
      %v1579 = vsub.f32 %v1497, %v1545
      %v1580 = vsub.f32 %v1499, %v1547
      %v1581 = vsub.f32 %v1501, %v1549
      %v1582 = vsub.f32 %v1503, %v1551
      %v1583 = vsub.f32 %v1505, %v1553
      %v1584 = vsub.f32 %v1507, %v1555
      %v1585 = vsub.f32 %v1509, %v1557
      %v1586 = vsub.f32 %v1511, %v1559
      %v1587 = vsub.f32 %v1513, %v1561
      %v1588 = vsub.f32 %v1515, %v1563
      %v1589 = vsub.f32 %v1517, %v1565
      %v1590 = vmul.f32 %v1566, 0.5
      %v1591 = vmul.f32 %v1567, 0.5
      %v1592 = vmul.f32 %v1568, 0.5
      %v1593 = vmul.f32 %v1569, 0.5
      %v1594 = vmul.f32 %v1570, 0.5
      %v1595 = vmul.f32 %v1571, 0.5
      %v1596 = vmul.f32 %v1572, 0.5
      %v1597 = vmul.f32 %v1573, 0.5
      %v1598 = vmul.f32 %v1574, 0.5
      %v1599 = vmul.f32 %v1575, 0.5
      %v1600 = vmul.f32 %v1576, 0.5
      %v1601 = vmul.f32 %v1577, 0.5
      %v1602 = vmul.f32 %v1578, 0.5
      %v1603 = vmul.f32 %v1579, 0.5
      %v1604 = vmul.f32 %v1580, 0.5
      %v1605 = vmul.f32 %v1581, 0.5
      %v1606 = vmul.f32 %v1582, 0.5
      %v1607 = vmul.f32 %v1583, 0.5
      %v1608 = vmul.f32 %v1584, 0.5
      %v1609 = vmul.f32 %v1585, 0.5
      %v1610 = vmul.f32 %v1586, 0.5
      %v1611 = vmul.f32 %v1587, 0.5
      %v1612 = vmul.f32 %v1588, 0.5
      %v1613 = vmul.f32 %v1589, 0.5
      %v1614 = vmul.f32 %v1590, %v1590
      %v1615 = vmul.f32 %v1591, %v1591
      %v1616 = vmul.f32 %v1592, %v1592
      %v1617 = vmul.f32 %v1593, %v1593
      %v1618 = vmul.f32 %v1594, %v1594
      %v1619 = vmul.f32 %v1595, %v1595
      %v1620 = vmul.f32 %v1596, %v1596
      %v1621 = vmul.f32 %v1597, %v1597
      %v1622 = vmul.f32 %v1598, %v1598
      %v1623 = vmul.f32 %v1599, %v1599
      %v1624 = vmul.f32 %v1600, %v1600
      %v1625 = vmul.f32 %v1601, %v1601
      %v1626 = vmul.f32 %v1602, %v1602
      %v1627 = vmul.f32 %v1603, %v1603
      %v1628 = vmul.f32 %v1604, %v1604
      %v1629 = vmul.f32 %v1605, %v1605
      %v1630 = vmul.f32 %v1606, %v1606
      %v1631 = vmul.f32 %v1607, %v1607
      %v1632 = vmul.f32 %v1608, %v1608
      %v1633 = vmul.f32 %v1609, %v1609
      %v1634 = vmul.f32 %v1610, %v1610
      %v1635 = vmul.f32 %v1611, %v1611
      %v1636 = vmul.f32 %v1612, %v1612
      %v1637 = vmul.f32 %v1613, %v1613
      %v1638 = vsel %vm114, %v1614, 0.0
      %v1639 = vsel %vm115, %v1615, 0.0
      %v1640 = vsel %vm114, %v1616, 0.0
      %v1641 = vsel %vm115, %v1617, 0.0
      %v1642 = vsel %vm114, %v1618, 0.0
      %v1643 = vsel %vm115, %v1619, 0.0
      %v1644 = vsel %vm114, %v1620, 0.0
      %v1645 = vsel %vm115, %v1621, 0.0
      %v1646 = vsel %vm114, %v1622, 0.0
      %v1647 = vsel %vm115, %v1623, 0.0
      %v1648 = vsel %vm114, %v1624, 0.0
      %v1649 = vsel %vm115, %v1625, 0.0
      %v1650 = vsel %vm114, %v1626, 0.0
      %v1651 = vsel %vm115, %v1627, 0.0
      %v1652 = vsel %vm114, %v1628, 0.0
      %v1653 = vsel %vm115, %v1629, 0.0
      %v1654 = vsel %vm114, %v1630, 0.0
      %v1655 = vsel %vm115, %v1631, 0.0
      %v1656 = vsel %vm114, %v1632, 0.0
      %v1657 = vsel %vm115, %v1633, 0.0
      %v1658 = vsel %vm114, %v1634, 0.0
      %v1659 = vsel %vm115, %v1635, 0.0
      %v1660 = vsel %vm114, %v1636, 0.0
      %v1661 = vsel %vm115, %v1637, 0.0
      %v1662 = vmul.f32 %v1638, 2.0
      %v1663 = vmul.f32 %v1639, 2.0
      %v1664 = vmul.f32 %v1640, 2.0
      %v1665 = vmul.f32 %v1641, 2.0
      %v1666 = vmul.f32 %v1642, 2.0
      %v1667 = vmul.f32 %v1643, 2.0
      %v1668 = vmul.f32 %v1644, 2.0
      %v1669 = vmul.f32 %v1645, 2.0
      %v1670 = vmul.f32 %v1646, 2.0
      %v1671 = vmul.f32 %v1647, 2.0
      %v1672 = vmul.f32 %v1648, 2.0
      %v1673 = vmul.f32 %v1649, 2.0
      %v1674 = vmul.f32 %v1650, 2.0
      %v1675 = vmul.f32 %v1651, 2.0
      %v1676 = vmul.f32 %v1652, 2.0
      %v1677 = vmul.f32 %v1653, 2.0
      %v1678 = vmul.f32 %v1654, 2.0
      %v1679 = vmul.f32 %v1655, 2.0
      %v1680 = vmul.f32 %v1656, 2.0
      %v1681 = vmul.f32 %v1657, 2.0
      %v1682 = vmul.f32 %v1658, 2.0
      %v1683 = vmul.f32 %v1659, 2.0
      %v1684 = vmul.f32 %v1660, 2.0
      %v1685 = vmul.f32 %v1661, 2.0
      %v1686 = vadd.f32 %v1446, %v1662
      %v1687 = vadd.f32 %v1447, %v1663
      %v1688 = vadd.f32 %v1448, %v1664
      %v1689 = vadd.f32 %v1449, %v1665
      %v1690 = vadd.f32 %v1450, %v1666
      %v1691 = vadd.f32 %v1451, %v1667
      %v1692 = vadd.f32 %v1452, %v1668
      %v1693 = vadd.f32 %v1453, %v1669
      %v1694 = vadd.f32 %v1454, %v1670
      %v1695 = vadd.f32 %v1455, %v1671
      %v1696 = vadd.f32 %v1456, %v1672
      %v1697 = vadd.f32 %v1457, %v1673
      %v1698 = vadd.f32 %v1458, %v1674
      %v1699 = vadd.f32 %v1459, %v1675
      %v1700 = vadd.f32 %v1460, %v1676
      %v1701 = vadd.f32 %v1461, %v1677
      %v1702 = vadd.f32 %v1462, %v1678
      %v1703 = vadd.f32 %v1463, %v1679
      %v1704 = vadd.f32 %v1464, %v1680
      %v1705 = vadd.f32 %v1465, %v1681
      %v1706 = vadd.f32 %v1466, %v1682
      %v1707 = vadd.f32 %v1467, %v1683
      %v1708 = vadd.f32 %v1468, %v1684
      %v1709 = vadd.f32 %v1469, %v1685
      %v1710 = vld [vmem:[#allocation4] sm:$0x1]
      %v1711 = vadd.f32 %v1686, %v1687
      %v1712 = vadd.f32 %v1711, %v1688
      %v1713 = vadd.f32 %v1712, %v1689
      %v1714 = vadd.f32 %v1713, %v1690
      %v1715 = vadd.f32 %v1714, %v1691
      %v1716 = vadd.f32 %v1715, %v1692
      %v1717 = vadd.f32 %v1716, %v1693
      %v1718 = vadd.f32 %v1717, %v1694
      %v1719 = vadd.f32 %v1718, %v1695
      %v1720 = vadd.f32 %v1719, %v1696
      %v1721 = vadd.f32 %v1720, %v1697
      %v1722 = vadd.f32 %v1721, %v1698
      %v1723 = vadd.f32 %v1722, %v1699
      %v1724 = vadd.f32 %v1723, %v1700
      %v1725 = vadd.f32 %v1724, %v1701
      %v1726 = vadd.f32 %v1725, %v1702
      %v1727 = vadd.f32 %v1726, %v1703
      %v1728 = vadd.f32 %v1727, %v1704
      %v1729 = vadd.f32 %v1728, %v1705
      %v1730 = vadd.f32 %v1729, %v1706
      %v1731 = vadd.f32 %v1730, %v1707
      %v1732 = vadd.f32 %v1731, %v1708
      %v1733 = vadd.f32 %v1732, %v1709
      %1734 = vadd.xlane.f32.xlu0 %v1733
      %v1735 = vpop.xlane.xlu0 %1734
      %v1736 = vrot.slane %v1735, 4
      %v1737 = vadd.f32 %v1735, %v1736
      %v1738 = vrot.slane %v1737, 2
      %v1739 = vadd.f32 %v1737, %v1738
      %v1740 = vrot.slane %v1739, 1
      %v1741 = vadd.f32 %v1739, %v1740
      %s1742 = vtos %v1741
      %v1743 = vstv %s1742
      %v1744 = vadd.f32 %v1710, %v1743
      %1745 = vst.msk [vmem:[#allocation4] sm:$0x1] %vm59, %v1744
      %v1746 = vld [vmem:[#allocation4] sm:$0x1]
      %1747 = vst.msk [vmem:[%s44] sm:$0x1] %vm59, %v1746
      %p1748 = scmp.lt.s32.totalorder %s7, 5
      %s1749 = scalar_select %p1748, %s7, 5
      %s1750 = scalar_lea.vmem %s1, %s1749
      // Predicated region
      $region17: #{tpu_custom_call.1} parent=11 // pred_check
        %p1751 = pneg %p22
      $region18: #{tpu_custom_call.1} parent=11 // pred_check_branch
        %1753 = sbr.rel (%p1751) target = $region20
      $region19: #{tpu_custom_call.1} parent=11 // pred_region
        _
      $region20: #{tpu_custom_call.1} parent=11 // pred_fallthru
        _
    $region12: #{tpu_custom_call.1} parent=5 // pred_fallthru
      _
    %p1754 = scmp.le.s32.totalorder 1, %s7
    // Predicated region
    $region21: #{tpu_custom_call.1} parent=5 // pred_check
      %p1755 = pneg %p1754
    $region22: #{tpu_custom_call.1} parent=5 // pred_check_branch
      %1757 = sbr.rel (%p1755) target = $region24
    $region23: #{tpu_custom_call.1} parent=5 // pred_region
      %s1758 = ssub.s32 %s7, 1
      // Predicated region
      $region25: #{tpu_custom_call.1} parent=23 // pred_check
        %p1759 = pneg %p28
      $region26: #{tpu_custom_call.1} parent=23 // pred_check_branch
        %1761 = sbr.rel (%p1759) target = $region28
      $region27: #{tpu_custom_call.1} parent=23 // pred_region
        %p1762 = scmp.lt.s32.totalorder %s12, 5
        %s1763 = scalar_select %p1762, %s12, 5
        %s1764 = scalar_lea.vmem %s1, %s1763
      $region28: #{tpu_custom_call.1} parent=23 // pred_fallthru
        _
    $region24: #{tpu_custom_call.1} parent=5 // pred_fallthru
      _
  $region6: #{tpu_custom_call.1} parent=0 // loop_footer
    %s11 = sadd.s32 1, %s7
  $region7: #{tpu_custom_call.1} parent=0 // loop_footer_branch
    %6 = sbr.rel target = $region3
  $region8: #{tpu_custom_call.1} parent=0 // loop_exit
    _
  %1765 = vsyncmov [#allocation3]
  %s1766 = vpop.sfrf %1765
  %p1767 = scmp.eq.s32.totalorder %s1766, 0
  %p1768 = pneg %p1767
  %1770 = shalt.err (%p1768)
  %s1771 = scalar_lea.sflag [#allocation3], 1
  %1772 = vsyncmov %s1771
  %s1773 = vpop.sfrf %1772
  %p1774 = scmp.eq.s32.totalorder %s1773, 0
  %p1775 = pneg %p1774
  %1777 = shalt.err (%p1775)

</llo_original>
